<compile_context>
chip_gen: v5e
topology: v5e:2x2
jax: 0.10.0
libtpu: 0.0.40
codegen_flags: <defaults>
</compile_context>

<pallas_src>
import jax
import jax.numpy as jnp
from jax.experimental import pallas as pl
from jax.experimental.pallas import tpu as pltpu

HIDDEN = 512
LANES = 128


def _round_up(x, m):
    return (x + m - 1) // m * m


def mlp_softmax_kernel(x_ref,
                       w1_ref, b1_ref,
                       w2_ref, b2_ref,
                       w3_ref, b3_ref,
                       w4_ref, b4_ref,
                       o_ref):
    # x and all weights are bf16 -> every dot is a single-pass bf16xbf16 MXU
    # op with f32 accumulation.  Bias-add / ReLU / softmax run in f32.
    x = x_ref[...]                                                   # bf16

    h = jnp.dot(x, w1_ref[...], preferred_element_type=jnp.float32) + b1_ref[...]
    h = jnp.maximum(h, 0.0).astype(jnp.bfloat16)

    h = jnp.dot(h, w2_ref[...], preferred_element_type=jnp.float32) + b2_ref[...]
    h = jnp.maximum(h, 0.0).astype(jnp.bfloat16)

    h = jnp.dot(h, w3_ref[...], preferred_element_type=jnp.float32) + b3_ref[...]
    h = jnp.maximum(h, 0.0).astype(jnp.bfloat16)

    # Logits stay f32: the -1e30 pad bias must remain finite in this dtype.
    logits = jnp.dot(h, w4_ref[...], preferred_element_type=jnp.float32) + b4_ref[...]

    # Numerically stable softmax over the 128-lane-padded class axis.  Padded
    # classes carry a -1e30 bias, so exp underflows to exactly 0 and the real
    # classes' probabilities match a softmax over `out` classes.
    m = jnp.max(logits, axis=-1, keepdims=True)
    e = jnp.exp(logits - m)
    denom = jnp.sum(e, axis=-1, keepdims=True)
    o_ref[...] = (e * pl.reciprocal(denom, approx=True)).astype(o_ref.dtype)


def pack_params(params):
    """One-time weight prep (outside the per-call path):
       bf16 weights, w1 rows padded to a 128-multiple of F, output layer padded
       to a full 128-lane tile."""
    in_size = params["w1"].shape[0]
    out_size = params["w4"].shape[1]
    f_pad = _round_up(max(in_size, LANES), LANES)
    n_pad = _round_up(max(out_size, LANES), LANES)
    packed = {
        # Zero-padded rows contribute exactly 0 to the first dot.
        "w1": jnp.zeros((f_pad, HIDDEN), jnp.bfloat16)
                 .at[:in_size, :].set(params["w1"].astype(jnp.bfloat16)),
        "b1": params["b1"].reshape(1, -1).astype(jnp.float32),
        "w2": params["w2"].astype(jnp.bfloat16),
        "b2": params["b2"].reshape(1, -1).astype(jnp.float32),
        "w3": params["w3"].astype(jnp.bfloat16),
        "b3": params["b3"].reshape(1, -1).astype(jnp.float32),
        "w4": jnp.zeros((HIDDEN, n_pad), jnp.bfloat16)
                 .at[:, :out_size].set(params["w4"].astype(jnp.bfloat16)),
        # Large negative *finite* f32 bias on padded classes.
        "b4": jnp.full((1, n_pad), -1e30, jnp.float32)
                 .at[:, :out_size].set(params["b4"].reshape(1, -1).astype(jnp.float32)),
    }
    return packed, out_size


def linear_model_forward(x, packed, out_size, *, block_rows=1024):
    """x: (B, input_size) float32 (or bf16). packed: output of pack_params."""
    B, F = x.shape
    f_pad = packed["w1"].shape[0]
    n_pad = packed["w4"].shape[1]

    # Batch tile:
    #  * multiple of 16 (bf16 sublane packing),
    #  * capped at 2048 -> resident bf16 weights + double-buffered bf16 x tiles
    #    + f32 intermediates stay well inside v7x's 64 MiB VMEM,
    #  * and small enough that the grid has >=2 tiles whenever B permits, so
    #    dimension_semantics=("parallel",) actually shards work on v7x's 2 TCs.
    cap = min(_round_up(block_rows, 16), 2048)
    tm = min(cap, max(16, _round_up(pl.cdiv(B, 2), 16)))
    b_pad = _round_up(B, tm)

    # bf16 x halves the only batch-scaled input DMA (biggest win on v5e) and
    # is exactly what the MXU consumes; zero-pad batch and feature dims so the
    # x block is lane-dense (F padded to a 128 multiple).
    x = x.astype(jnp.bfloat16)
    if b_pad != B or f_pad != F:
        x = jnp.pad(x, ((0, b_pad - B), (0, f_pad - F)))
    grid = (b_pad // tm,)

    def resident(arr):
        # Constant block index -> DMA'd once, stays VMEM-resident across tiles.
        return pl.BlockSpec(arr.shape, lambda i, _nd=arr.ndim: (0,) * _nd)

    args = (x,
            packed["w1"], packed["b1"],
            packed["w2"], packed["b2"],
            packed["w3"], packed["b3"],
            packed["w4"], packed["b4"])

    in_specs = [pl.BlockSpec((tm, f_pad), lambda i: (i, 0))] + \
               [resident(a) for a in args[1:]]

    out = pl.pallas_call(
        mlp_softmax_kernel,
        out_shape=jax.ShapeDtypeStruct((b_pad, n_pad), jnp.float32),
        grid=grid,
        in_specs=in_specs,
        out_specs=pl.BlockSpec((tm, n_pad), lambda i: (i, 0)),
        compiler_params=pltpu.CompilerParams(
            dimension_semantics=("parallel",),       # shards batch tiles on v7x's 2 TCs
            vmem_limit_bytes=64 * 1024 * 1024),      # room for tm=2048 tiles on v5e/v6e,
                                                     # still within v7x's 64 MiB physical
    )(*args)

    return out[:B, :out_size]


def init_params(key, input_size, output_size):
    """Deterministic synthetic init (shapes match torch Linear layers)."""
    ks = jax.random.split(key, 8)
    dims = [(input_size, HIDDEN), (HIDDEN, HIDDEN), (HIDDEN, HIDDEN), (HIDDEN, output_size)]
    params = {}
    for i, (fan_in, fan_out) in enumerate(dims, start=1):
        bound = 1.0 / (fan_in ** 0.5)
        params[f"w{i}"] = jax.random.uniform(
            ks[2 * (i - 1)], (fan_in, fan_out), jnp.float32, -bound, bound)
        params[f"b{i}"] = jax.random.uniform(
            ks[2 * (i - 1) + 1], (1, fan_out), jnp.float32, -bound, bound)
    return params


def reference_forward(x, params):
    """Pure-JAX reference using the same bf16 matmul path as the kernel."""
    def dot(a, w):
        return jnp.dot(a.astype(jnp.bfloat16), w.astype(jnp.bfloat16),
                       preferred_element_type=jnp.float32)
    h = jnp.maximum(dot(x, params["w1"]) + params["b1"], 0.0)
    h = jnp.maximum(dot(h, params["w2"]) + params["b2"], 0.0)
    h = jnp.maximum(dot(h, params["w3"]) + params["b3"], 0.0)
    logits = dot(h, params["w4"]) + params["b4"]
    return jax.nn.softmax(logits, axis=1)


if __name__ == "__main__":
    key = jax.random.PRNGKey(0)
    k_x, k_p = jax.random.split(key)

    batch = 50            # not a multiple of the batch tile (exercises padding + 2-tile grid)
    input_size = 32       # not a multiple of 128 (exercises feature padding)
    output_size = 10

    x = jax.random.normal(k_x, (batch, input_size), jnp.float32)
    params = init_params(k_p, input_size, output_size)
    packed, out_size = pack_params(params)

    out = linear_model_forward(x, packed, out_size)
    out = jax.block_until_ready(out)

    ref = reference_forward(x, params)
    assert out.shape == (batch, output_size)
    assert jnp.allclose(out, ref, atol=5e-3, rtol=5e-2), float(jnp.max(jnp.abs(out - ref)))
    # approx reciprocal -> rows sum to 1 within EUP accuracy
    assert jnp.allclose(jnp.sum(out, axis=1), 1.0, atol=5e-3)

    print("KERNEL_OK")
</pallas_src>

<mosaic_0001>
module attributes {stable_mosaic.version = 11 : i64} {
  func.func @mlp_softmax_kernel(%arg0: i32, %arg1: memref<32x128xbf16, #tpu.memory_space<vmem>>, %arg2: memref<128x512xbf16, #tpu.memory_space<vmem>>, %arg3: memref<1x512xf32, #tpu.memory_space<vmem>>, %arg4: memref<512x512xbf16, #tpu.memory_space<vmem>>, %arg5: memref<1x512xf32, #tpu.memory_space<vmem>>, %arg6: memref<512x512xbf16, #tpu.memory_space<vmem>>, %arg7: memref<1x512xf32, #tpu.memory_space<vmem>>, %arg8: memref<512x128xbf16, #tpu.memory_space<vmem>>, %arg9: memref<1x128xf32, #tpu.memory_space<vmem>>, %arg10: memref<32x128xf32, #tpu.memory_space<vmem>>) attributes {dimension_semantics = [#tpu.dimension_semantics<parallel>], iteration_bounds = array<i64: 2>, scalar_prefetch = 0 : i64, scratch_operands = 0 : i64, tpu.core_type = #tpu.core_type<tc>, window_params = [{transform_indices = @transform_0, window_bounds = array<i64: 32, 128>}, {pipeline_mode = #tpu.pipeline_mode<synchronous>, transform_indices = @transform_1, window_bounds = array<i64: 128, 512>}, {pipeline_mode = #tpu.pipeline_mode<synchronous>, transform_indices = @transform_2, window_bounds = array<i64: 1, 512>}, {pipeline_mode = #tpu.pipeline_mode<synchronous>, transform_indices = @transform_3, window_bounds = array<i64: 512, 512>}, {pipeline_mode = #tpu.pipeline_mode<synchronous>, transform_indices = @transform_4, window_bounds = array<i64: 1, 512>}, {pipeline_mode = #tpu.pipeline_mode<synchronous>, transform_indices = @transform_5, window_bounds = array<i64: 512, 512>}, {pipeline_mode = #tpu.pipeline_mode<synchronous>, transform_indices = @transform_6, window_bounds = array<i64: 1, 512>}, {pipeline_mode = #tpu.pipeline_mode<synchronous>, transform_indices = @transform_7, window_bounds = array<i64: 512, 128>}, {pipeline_mode = #tpu.pipeline_mode<synchronous>, transform_indices = @transform_8, window_bounds = array<i64: 1, 128>}, {transform_indices = @transform_9, window_bounds = array<i64: 32, 128>}]} {
    %c0 = arith.constant 0 : index
    %c0_0 = arith.constant 0 : index
    %0 = vector.load %arg1[%c0, %c0_0] : memref<32x128xbf16, #tpu.memory_space<vmem>>, vector<32x128xbf16>
    %c0_1 = arith.constant 0 : index
    %c0_2 = arith.constant 0 : index
    %1 = vector.load %arg2[%c0_1, %c0_2] : memref<128x512xbf16, #tpu.memory_space<vmem>>, vector<128x512xbf16>
    %cst = arith.constant dense<0.000000e+00> : vector<32x512xf32>
    %2 = tpu.matmul %0, %1, %cst {dimension_numbers = #tpu.dot_dimension_numbers<[1], [0], [0], [1], [0, 0, 1, 1], [], []>} : vector<32x128xbf16>, vector<128x512xbf16>, vector<32x512xf32> -> vector<32x512xf32>
    %c0_3 = arith.constant 0 : index
    %c0_4 = arith.constant 0 : index
    %3 = vector.load %arg3[%c0_3, %c0_4] : memref<1x512xf32, #tpu.memory_space<vmem>>, vector<1x512xf32>
    %4 = vector.broadcast %3 : vector<1x512xf32> to vector<32x512xf32>
    %5 = arith.addf %2, %4 : vector<32x512xf32>
    %cst_5 = arith.constant 0.000000e+00 : f32
    %6 = vector.broadcast %cst_5 : f32 to vector<32x512xf32>
    %7 = arith.maximumf %5, %6 : vector<32x512xf32>
    %8 = arith.truncf %7 : vector<32x512xf32> to vector<32x512xbf16>
    %c0_6 = arith.constant 0 : index
    %c0_7 = arith.constant 0 : index
    %9 = vector.load %arg4[%c0_6, %c0_7] : memref<512x512xbf16, #tpu.memory_space<vmem>>, vector<512x512xbf16>
    %cst_8 = arith.constant dense<0.000000e+00> : vector<32x512xf32>
    %10 = tpu.matmul %8, %9, %cst_8 {dimension_numbers = #tpu.dot_dimension_numbers<[1], [0], [0], [1], [0, 0, 1, 1], [], []>} : vector<32x512xbf16>, vector<512x512xbf16>, vector<32x512xf32> -> vector<32x512xf32>
    %c0_9 = arith.constant 0 : index
    %c0_10 = arith.constant 0 : index
    %11 = vector.load %arg5[%c0_9, %c0_10] : memref<1x512xf32, #tpu.memory_space<vmem>>, vector<1x512xf32>
    %12 = vector.broadcast %11 : vector<1x512xf32> to vector<32x512xf32>
    %13 = arith.addf %10, %12 : vector<32x512xf32>
    %cst_11 = arith.constant 0.000000e+00 : f32
    %14 = vector.broadcast %cst_11 : f32 to vector<32x512xf32>
    %15 = arith.maximumf %13, %14 : vector<32x512xf32>
    %16 = arith.truncf %15 : vector<32x512xf32> to vector<32x512xbf16>
    %c0_12 = arith.constant 0 : index
    %c0_13 = arith.constant 0 : index
    %17 = vector.load %arg6[%c0_12, %c0_13] : memref<512x512xbf16, #tpu.memory_space<vmem>>, vector<512x512xbf16>
    %cst_14 = arith.constant dense<0.000000e+00> : vector<32x512xf32>
    %18 = tpu.matmul %16, %17, %cst_14 {dimension_numbers = #tpu.dot_dimension_numbers<[1], [0], [0], [1], [0, 0, 1, 1], [], []>} : vector<32x512xbf16>, vector<512x512xbf16>, vector<32x512xf32> -> vector<32x512xf32>
    %c0_15 = arith.constant 0 : index
    %c0_16 = arith.constant 0 : index
    %19 = vector.load %arg7[%c0_15, %c0_16] : memref<1x512xf32, #tpu.memory_space<vmem>>, vector<1x512xf32>
    %20 = vector.broadcast %19 : vector<1x512xf32> to vector<32x512xf32>
    %21 = arith.addf %18, %20 : vector<32x512xf32>
    %cst_17 = arith.constant 0.000000e+00 : f32
    %22 = vector.broadcast %cst_17 : f32 to vector<32x512xf32>
    %23 = arith.maximumf %21, %22 : vector<32x512xf32>
    %24 = arith.truncf %23 : vector<32x512xf32> to vector<32x512xbf16>
    %c0_18 = arith.constant 0 : index
    %c0_19 = arith.constant 0 : index
    %25 = vector.load %arg8[%c0_18, %c0_19] : memref<512x128xbf16, #tpu.memory_space<vmem>>, vector<512x128xbf16>
    %cst_20 = arith.constant dense<0.000000e+00> : vector<32x128xf32>
    %26 = tpu.matmul %24, %25, %cst_20 {dimension_numbers = #tpu.dot_dimension_numbers<[1], [0], [0], [1], [0, 0, 1, 1], [], []>} : vector<32x512xbf16>, vector<512x128xbf16>, vector<32x128xf32> -> vector<32x128xf32>
    %c0_21 = arith.constant 0 : index
    %c0_22 = arith.constant 0 : index
    %27 = vector.load %arg9[%c0_21, %c0_22] : memref<1x128xf32, #tpu.memory_space<vmem>>, vector<1x128xf32>
    %28 = vector.broadcast %27 : vector<1x128xf32> to vector<32x128xf32>
    %29 = arith.addf %26, %28 : vector<32x128xf32>
    %cst_23 = arith.constant dense<0xFF800000> : vector<32xf32>
    %30 = vector.multi_reduction <maximumf>, %29, %cst_23 [1] : vector<32x128xf32> to vector<32xf32>
    %31 = vector.shape_cast %30 : vector<32xf32> to vector<32x1xf32>
    %32 = vector.broadcast %31 : vector<32x1xf32> to vector<32x128xf32>
    %33 = arith.subf %29, %32 : vector<32x128xf32>
    %34 = math.exp %33 : vector<32x128xf32>
    %cst_24 = arith.constant dense<0.000000e+00> : vector<32xf32>
    %35 = vector.multi_reduction <add>, %34, %cst_24 [1] : vector<32x128xf32> to vector<32xf32>
    %36 = vector.shape_cast %35 : vector<32xf32> to vector<32x1xf32>
    %37 = tpu.reciprocal %36 {approx = true} : vector<32x1xf32> -> vector<32x1xf32>
    %38 = vector.broadcast %37 : vector<32x1xf32> to vector<32x128xf32>
    %39 = arith.mulf %34, %38 : vector<32x128xf32>
    %c0_25 = arith.constant 0 : index
    %c0_26 = arith.constant 0 : index
    %40 = vector.load %arg10[%c0_25, %c0_26] : memref<32x128xf32, #tpu.memory_space<vmem>>, vector<32x128xf32>
    tpu.vector_store %arg10[%c0_25, %c0_26], %39 {strides = array<i32>} : memref<32x128xf32, #tpu.memory_space<vmem>>, vector<32x128xf32>,
    return
  }
  func.func @transform_0(%arg0: i32) -> (i32, i32) {
    %c0_i32 = arith.constant 0 : i32
    %c0_i32_0 = arith.constant 0 : i32
    return %arg0, %c0_i32 : i32, i32
  }
  func.func @transform_1(%arg0: i32) -> (i32, i32) {
    %c0_i32 = arith.constant 0 : i32
    %c0_i32_0 = arith.constant 0 : i32
    %c0_i32_1 = arith.constant 0 : i32
    return %c0_i32, %c0_i32_0 : i32, i32
  }
  func.func @transform_2(%arg0: i32) -> (i32, i32) {
    %c0_i32 = arith.constant 0 : i32
    %c0_i32_0 = arith.constant 0 : i32
    %c0_i32_1 = arith.constant 0 : i32
    return %c0_i32, %c0_i32_0 : i32, i32
  }
  func.func @transform_3(%arg0: i32) -> (i32, i32) {
    %c0_i32 = arith.constant 0 : i32
    %c0_i32_0 = arith.constant 0 : i32
    %c0_i32_1 = arith.constant 0 : i32
    return %c0_i32, %c0_i32_0 : i32, i32
  }
  func.func @transform_4(%arg0: i32) -> (i32, i32) {
    %c0_i32 = arith.constant 0 : i32
    %c0_i32_0 = arith.constant 0 : i32
    %c0_i32_1 = arith.constant 0 : i32
    return %c0_i32, %c0_i32_0 : i32, i32
  }
  func.func @transform_5(%arg0: i32) -> (i32, i32) {
    %c0_i32 = arith.constant 0 : i32
    %c0_i32_0 = arith.constant 0 : i32
    %c0_i32_1 = arith.constant 0 : i32
    return %c0_i32, %c0_i32_0 : i32, i32
  }
  func.func @transform_6(%arg0: i32) -> (i32, i32) {
    %c0_i32 = arith.constant 0 : i32
    %c0_i32_0 = arith.constant 0 : i32
    %c0_i32_1 = arith.constant 0 : i32
    return %c0_i32, %c0_i32_0 : i32, i32
  }
  func.func @transform_7(%arg0: i32) -> (i32, i32) {
    %c0_i32 = arith.constant 0 : i32
    %c0_i32_0 = arith.constant 0 : i32
    %c0_i32_1 = arith.constant 0 : i32
    return %c0_i32, %c0_i32_0 : i32, i32
  }
  func.func @transform_8(%arg0: i32) -> (i32, i32) {
    %c0_i32 = arith.constant 0 : i32
    %c0_i32_0 = arith.constant 0 : i32
    %c0_i32_1 = arith.constant 0 : i32
    return %c0_i32, %c0_i32_0 : i32, i32
  }
  func.func @transform_9(%arg0: i32) -> (i32, i32) {
    %c0_i32 = arith.constant 0 : i32
    %c0_i32_0 = arith.constant 0 : i32
    return %arg0, %c0_i32 : i32, i32
  }
}

</mosaic_0001>

<llo_original>
// kernel: tpu_custom_call.1
$region0: #{tpu_custom_call.1}
  #allocation0 [shape = 'u32[]', space=smem, size = 0x4, offset = 0x4, fixed_abs, tag = 'smem constant byte address 0x4 - core index']
  #allocation1 [shape = 'u32[72,128]{1,0:T(1,128)}', space=vmem, size = 0x9000, scoped, tag = 'internal scratch']
  %s0 = inlined_call_operand.hbm [shape: bf16[64,128], index: 0, kind: input, shape index: {}]
  %s1 = inlined_call_operand.hbm [shape: bf16[128,512], index: 1, kind: input, shape index: {}]
  %s2 = inlined_call_operand.hbm [shape: f32[1,512], index: 2, kind: input, shape index: {}]
  %s3 = inlined_call_operand.hbm [shape: bf16[512,512], index: 3, kind: input, shape index: {}]
  %s4 = inlined_call_operand.hbm [shape: f32[1,512], index: 4, kind: input, shape index: {}]
  %s5 = inlined_call_operand.hbm [shape: bf16[512,512], index: 5, kind: input, shape index: {}]
  %s6 = inlined_call_operand.vmem [shape: f32[1,512], index: 6, kind: input, shape index: {}]
  %s7 = inlined_call_operand.hbm [shape: bf16[512,128], index: 7, kind: input, shape index: {}]
  %s8 = inlined_call_operand.vmem [shape: f32[1,128], index: 8, kind: input, shape index: {}]
  %s9 = inlined_call_operand.hbm [shape: f32[64,128], index: 9, kind: output, shape index: {}]
  %s10 = sld [smem:[#allocation0]]
  $region97: #{tpu_custom_call.1} parent=0
    _
  %s12 = ssub.s32 1, %s10
  %s13 = scalar_select 0, %s12, %s10
  $region1: #{tpu_custom_call.1} parent=0
    #allocation2 [shape = 'u8[16384]{0}', space=vmem, size = 0x4000, scoped, tag = 'input window, operand 0']
    #allocation3 [shape = 's32[2]{0}', space=sflag, size = 0x8, scoped, tag = 'scoped memory for tpu_custom_call.1']
    #allocation4 [shape = 's32[2]{0}', space=sflag, size = 0x8, scoped, tag = 'scoped memory for tpu_custom_call.1']
    #allocation5 [shape = 'u8[131072]{0}', space=vmem, size = 0x20000, scoped, tag = 'input window, operand 1, single buffered']
    #allocation6 [shape = 's32[1]{0}', space=sflag, size = 0x4, scoped, tag = 'scoped memory for tpu_custom_call.1']
    #allocation7 [shape = 'u8[2048]{0}', space=vmem, size = 0x800, scoped, tag = 'input window, operand 2, single buffered']
    #allocation8 [shape = 'u8[524288]{0}', space=vmem, size = 0x80000, scoped, tag = 'input window, operand 3, single buffered']
    #allocation9 [shape = 's32[1]{0}', space=sflag, size = 0x4, scoped, tag = 'scoped memory for tpu_custom_call.1']
    #allocation10 [shape = 'u8[2048]{0}', space=vmem, size = 0x800, scoped, tag = 'input window, operand 4, single buffered']
    #allocation11 [shape = 'u8[524288]{0}', space=vmem, size = 0x80000, scoped, tag = 'input window, operand 5, single buffered']
    #allocation12 [shape = 's32[1]{0}', space=sflag, size = 0x4, scoped, tag = 'scoped memory for tpu_custom_call.1']
    #allocation13 [shape = 'u8[131072]{0}', space=vmem, size = 0x20000, scoped, tag = 'input window, operand 7, single buffered']
    #allocation14 [shape = 'u8[32768]{0}', space=vmem, size = 0x8000, scoped, tag = 'output window, operand 0']
    %14 = vsyncpa [#allocation3], 0
    %s15 = scalar_lea.sflag [#allocation3], 1
    %16 = vsyncpa %s15, 0
    %17 = vsyncpa [#allocation6], 0
    %18 = vsyncpa [#allocation9], 0
    %19 = vsyncpa [#allocation12], 0
    %20 = vsyncpa [#allocation4], 0
    %s21 = scalar_lea.sflag [#allocation4], 1
    %22 = vsyncpa %s21, 0
    loop: start=0, step=1, limit=4
    $region2: #{tpu_custom_call.1} parent=1 // loop_pre_header
      _
    $region3: #{tpu_custom_call.1} parent=1 // loop_header
      %s24 = sphi 0, %s28
      %p25 = scmp.ge.s32.totalorder %s24, 4
      %s34 = sphi 0, %s36
      %s37 = sphi 0, %s34
      %s38 = sphi 0, %s37
      %s54 = sphi 0, %s38
      %s58 = sphi 0, %s58
      %s60 = sphi 0, %s58
      %s61 = sphi 0, %s60
      %s75 = sphi 0, %s61
      %s79 = sphi 0, %s79
      %s81 = sphi 0, %s79
      %s82 = sphi 0, %s81
      %s96 = sphi 0, %s82
      %s100 = sphi 0, %s100
      %s102 = sphi 0, %s100
      %s103 = sphi 0, %s102
      %s117 = sphi 0, %s103
      %s121 = sphi 0, %s121
      %s123 = sphi 0, %s121
      %s124 = sphi 0, %s123
      %s138 = sphi 0, %s124
      %s142 = sphi 0, %s142
      %s144 = sphi 0, %s142
      %s145 = sphi 0, %s144
      %s159 = sphi 0, %s145
      %s163 = sphi 0, %s163
      %s165 = sphi 0, %s163
      %s166 = sphi 0, %s165
      %s180 = sphi 0, %s166
      %s184 = sphi 0, %s184
      %s186 = sphi 0, %s184
      %s187 = sphi 0, %s186
      %s201 = sphi 0, %s187
      %s205 = sphi 0, %s205
      %s207 = sphi 0, %s205
      %s208 = sphi 0, %s207
      %s222 = sphi 0, %s208
      %s228 = sphi 0, %s230
      %s231 = sphi 0, %s228
      %s232 = sphi 0, %s231
      %s248 = sphi 0, %s232
    $region4: #{tpu_custom_call.1} parent=1 // loop_header_branch
      %27 = sbr.rel (%p25) target = $region8
    $region5: #{tpu_custom_call.1} parent=1 // loop_body
      %s29 = ssub.s32 %s24, 1
      %s30 = ssub.s32 %s24, 2
      %s31 = sadd.s32 %s24, 1
      %s32 = ssub.s32 %s24, %s31
      %p33 = scmp.eq.s32.totalorder %s32, 0
      %s35 = sadd.s32 %s34, 1
      %s36 = scalar_select %p33, %s34, %s35
      %p39 = pneg %p33
      %p40 = scmp.eq.s32.totalorder %s24, 1
      %p41 = por %p39, %p40
      %p42 = scmp.ne.s32.totalorder %s34, %s37
      %p43 = scmp.eq.s32.totalorder %s24, 0
      %p44 = por %p42, %p43
      %p45 = scmp.ne.s32.totalorder %s34, %s37
      %p46 = scmp.eq.s32.totalorder %s29, 1
      %p47 = por %p45, %p46
      %p48 = scmp.ne.s32.totalorder %s37, %s38
      %p49 = scmp.eq.s32.totalorder %s29, 0
      %p50 = por %p48, %p49
      %p51 = scmp.ne.s32.totalorder %s37, %s38
      %p52 = scmp.eq.s32.totalorder %s30, 1
      %p53 = por %p51, %p52
      %p55 = scmp.ne.s32.totalorder %s38, %s54
      %p56 = scmp.eq.s32.totalorder %s30, 0
      %p57 = por %p55, %p56
      %s59 = sadd.s32 %s58, 1
      %p62 = scmp.eq.s32.totalorder %s24, 1
      %p63 = scmp.ne.s32.totalorder %s58, %s60
      %p64 = scmp.eq.s32.totalorder %s24, 0
      %p65 = por %p63, %p64
      %p66 = scmp.ne.s32.totalorder %s58, %s60
      %p67 = scmp.eq.s32.totalorder %s29, 1
      %p68 = por %p66, %p67
      %p69 = scmp.ne.s32.totalorder %s60, %s61
      %p70 = scmp.eq.s32.totalorder %s29, 0
      %p71 = por %p69, %p70
      %p72 = scmp.ne.s32.totalorder %s60, %s61
      %p73 = scmp.eq.s32.totalorder %s30, 1
      %p74 = por %p72, %p73
      %p76 = scmp.ne.s32.totalorder %s61, %s75
      %p77 = scmp.eq.s32.totalorder %s30, 0
      %p78 = por %p76, %p77
      %s80 = sadd.s32 %s79, 1
      %p83 = scmp.eq.s32.totalorder %s24, 1
      %p84 = scmp.ne.s32.totalorder %s79, %s81
      %p85 = scmp.eq.s32.totalorder %s24, 0
      %p86 = por %p84, %p85
      %p87 = scmp.ne.s32.totalorder %s79, %s81
      %p88 = scmp.eq.s32.totalorder %s29, 1
      %p89 = por %p87, %p88
      %p90 = scmp.ne.s32.totalorder %s81, %s82
      %p91 = scmp.eq.s32.totalorder %s29, 0
      %p92 = por %p90, %p91
      %p93 = scmp.ne.s32.totalorder %s81, %s82
      %p94 = scmp.eq.s32.totalorder %s30, 1
      %p95 = por %p93, %p94
      %p97 = scmp.ne.s32.totalorder %s82, %s96
      %p98 = scmp.eq.s32.totalorder %s30, 0
      %p99 = por %p97, %p98
      %s101 = sadd.s32 %s100, 1
      %p104 = scmp.eq.s32.totalorder %s24, 1
      %p105 = scmp.ne.s32.totalorder %s100, %s102
      %p106 = scmp.eq.s32.totalorder %s24, 0
      %p107 = por %p105, %p106
      %p108 = scmp.ne.s32.totalorder %s100, %s102
      %p109 = scmp.eq.s32.totalorder %s29, 1
      %p110 = por %p108, %p109
      %p111 = scmp.ne.s32.totalorder %s102, %s103
      %p112 = scmp.eq.s32.totalorder %s29, 0
      %p113 = por %p111, %p112
      %p114 = scmp.ne.s32.totalorder %s102, %s103
      %p115 = scmp.eq.s32.totalorder %s30, 1
      %p116 = por %p114, %p115
      %p118 = scmp.ne.s32.totalorder %s103, %s117
      %p119 = scmp.eq.s32.totalorder %s30, 0
      %p120 = por %p118, %p119
      %s122 = sadd.s32 %s121, 1
      %p125 = scmp.eq.s32.totalorder %s24, 1
      %p126 = scmp.ne.s32.totalorder %s121, %s123
      %p127 = scmp.eq.s32.totalorder %s24, 0
      %p128 = por %p126, %p127
      %p129 = scmp.ne.s32.totalorder %s121, %s123
      %p130 = scmp.eq.s32.totalorder %s29, 1
      %p131 = por %p129, %p130
      %p132 = scmp.ne.s32.totalorder %s123, %s124
      %p133 = scmp.eq.s32.totalorder %s29, 0
      %p134 = por %p132, %p133
      %p135 = scmp.ne.s32.totalorder %s123, %s124
      %p136 = scmp.eq.s32.totalorder %s30, 1
      %p137 = por %p135, %p136
      %p139 = scmp.ne.s32.totalorder %s124, %s138
      %p140 = scmp.eq.s32.totalorder %s30, 0
      %p141 = por %p139, %p140
      %s143 = sadd.s32 %s142, 1
      %p146 = scmp.eq.s32.totalorder %s24, 1
      %p147 = scmp.ne.s32.totalorder %s142, %s144
      %p148 = scmp.eq.s32.totalorder %s24, 0
      %p149 = por %p147, %p148
      %p150 = scmp.ne.s32.totalorder %s142, %s144
      %p151 = scmp.eq.s32.totalorder %s29, 1
      %p152 = por %p150, %p151
      %p153 = scmp.ne.s32.totalorder %s144, %s145
      %p154 = scmp.eq.s32.totalorder %s29, 0
      %p155 = por %p153, %p154
      %p156 = scmp.ne.s32.totalorder %s144, %s145
      %p157 = scmp.eq.s32.totalorder %s30, 1
      %p158 = por %p156, %p157
      %p160 = scmp.ne.s32.totalorder %s145, %s159
      %p161 = scmp.eq.s32.totalorder %s30, 0
      %p162 = por %p160, %p161
      %s164 = sadd.s32 %s163, 1
      %p167 = scmp.eq.s32.totalorder %s24, 1
      %p168 = scmp.ne.s32.totalorder %s163, %s165
      %p169 = scmp.eq.s32.totalorder %s24, 0
      %p170 = por %p168, %p169
      %p171 = scmp.ne.s32.totalorder %s163, %s165
      %p172 = scmp.eq.s32.totalorder %s29, 1
      %p173 = por %p171, %p172
      %p174 = scmp.ne.s32.totalorder %s165, %s166
      %p175 = scmp.eq.s32.totalorder %s29, 0
      %p176 = por %p174, %p175
      %p177 = scmp.ne.s32.totalorder %s165, %s166
      %p178 = scmp.eq.s32.totalorder %s30, 1
      %p179 = por %p177, %p178
      %p181 = scmp.ne.s32.totalorder %s166, %s180
      %p182 = scmp.eq.s32.totalorder %s30, 0
      %p183 = por %p181, %p182
      %s185 = sadd.s32 %s184, 1
      %p188 = scmp.eq.s32.totalorder %s24, 1
      %p189 = scmp.ne.s32.totalorder %s184, %s186
      %p190 = scmp.eq.s32.totalorder %s24, 0
      %p191 = por %p189, %p190
      %p192 = scmp.ne.s32.totalorder %s184, %s186
      %p193 = scmp.eq.s32.totalorder %s29, 1
      %p194 = por %p192, %p193
      %p195 = scmp.ne.s32.totalorder %s186, %s187
      %p196 = scmp.eq.s32.totalorder %s29, 0
      %p197 = por %p195, %p196
      %p198 = scmp.ne.s32.totalorder %s186, %s187
      %p199 = scmp.eq.s32.totalorder %s30, 1
      %p200 = por %p198, %p199
      %p202 = scmp.ne.s32.totalorder %s187, %s201
      %p203 = scmp.eq.s32.totalorder %s30, 0
      %p204 = por %p202, %p203
      %s206 = sadd.s32 %s205, 1
      %p209 = scmp.eq.s32.totalorder %s24, 1
      %p210 = scmp.ne.s32.totalorder %s205, %s207
      %p211 = scmp.eq.s32.totalorder %s24, 0
      %p212 = por %p210, %p211
      %p213 = scmp.ne.s32.totalorder %s205, %s207
      %p214 = scmp.eq.s32.totalorder %s29, 1
      %p215 = por %p213, %p214
      %p216 = scmp.ne.s32.totalorder %s207, %s208
      %p217 = scmp.eq.s32.totalorder %s29, 0
      %p218 = por %p216, %p217
      %p219 = scmp.ne.s32.totalorder %s207, %s208
      %p220 = scmp.eq.s32.totalorder %s30, 1
      %p221 = por %p219, %p220
      %p223 = scmp.ne.s32.totalorder %s208, %s222
      %p224 = scmp.eq.s32.totalorder %s30, 0
      %p225 = por %p223, %p224
      %s226 = ssub.s32 %s24, %s31
      %p227 = scmp.eq.s32.totalorder %s226, 0
      %s229 = sadd.s32 %s228, 1
      %s230 = scalar_select %p227, %s228, %s229
      %p233 = pneg %p227
      %p234 = scmp.eq.s32.totalorder %s24, 1
      %p235 = por %p233, %p234
      %p236 = scmp.ne.s32.totalorder %s228, %s231
      %p237 = scmp.eq.s32.totalorder %s24, 0
      %p238 = por %p236, %p237
      %p239 = scmp.ne.s32.totalorder %s228, %s231
      %p240 = scmp.eq.s32.totalorder %s29, 1
      %p241 = por %p239, %p240
      %p242 = scmp.ne.s32.totalorder %s231, %s232
      %p243 = scmp.eq.s32.totalorder %s29, 0
      %p244 = por %p242, %p243
      %p245 = scmp.ne.s32.totalorder %s231, %s232
      %p246 = scmp.eq.s32.totalorder %s30, 1
      %p247 = por %p245, %p246
      %p249 = scmp.ne.s32.totalorder %s232, %s248
      %p250 = scmp.eq.s32.totalorder %s30, 0
      %p251 = por %p249, %p250
      %p252 = scmp.le.s32.totalorder 1, %s24
      %p253 = scmp.lt.s32.totalorder %s24, 3
      %p254 = pnand %p252, %p253
      %p255 = pneg %p254
      // Predicated region
      $region9: #{tpu_custom_call.1} parent=5 // pred_check
        _
      $region10: #{tpu_custom_call.1} parent=5 // pred_check_branch
        %257 = sbr.rel (%p254) target = $region12
      $region11: #{tpu_custom_call.1} parent=5 // pred_region
        %s258 = ssub.s32 %s24, 1
        // Predicated region
        $region13: #{tpu_custom_call.1} parent=11 // pred_check
          %p259 = pneg %p71
        $region14: #{tpu_custom_call.1} parent=11 // pred_check_branch
          %261 = sbr.rel (%p259) target = $region16
        $region15: #{tpu_custom_call.1} parent=11 // pred_region
          %263 = vsyncadd [#allocation6], 0
          %s264 = sshll.u32 %s1, 4
          %s265 = int_to_ptr.hbm [resolvable:$true] %s264
          %s266 = sshll.u32 [#allocation5], 4
          %s267 = int_to_ptr.vmem [resolvable:$true] %s266
          %272 = dma.hbm_to_vmem [thread:$0]  %s265, 4096, %s267, [#allocation6], 256, 256, 16
        $region16: #{tpu_custom_call.1} parent=11 // pred_fallthru
          _
        // Predicated region
        $region17: #{tpu_custom_call.1} parent=11 // pred_check
          %p273 = pneg %p92
        $region18: #{tpu_custom_call.1} parent=11 // pred_check_branch
          %275 = sbr.rel (%p273) target = $region20
        $region19: #{tpu_custom_call.1} parent=11 // pred_region
          %277 = vsyncadd [#allocation6], 0
          %s279 = sshll.u32 %s2, 4
          %s280 = int_to_ptr.hbm [resolvable:$true] %s279
          %s281 = sshll.u32 [#allocation7], 4
          %s282 = int_to_ptr.vmem [resolvable:$true] %s281
          %284 = dma.hbm_to_vmem [thread:$0]  %s280, 64, %s282, [#allocation6]
        $region20: #{tpu_custom_call.1} parent=11 // pred_fallthru
          _
        // Predicated region
        $region21: #{tpu_custom_call.1} parent=11 // pred_check
          %p285 = pneg %p113
        $region22: #{tpu_custom_call.1} parent=11 // pred_check_branch
          %287 = sbr.rel (%p285) target = $region24
        $region23: #{tpu_custom_call.1} parent=11 // pred_region
          %289 = vsyncadd [#allocation9], 0
          %s290 = sshll.u32 %s3, 4
          %s291 = int_to_ptr.hbm [resolvable:$true] %s290
          %s292 = sshll.u32 [#allocation8], 4
          %s293 = int_to_ptr.vmem [resolvable:$true] %s292
          %298 = dma.hbm_to_vmem [thread:$0]  %s291, 16384, %s293, [#allocation9], 256, 256, 16
        $region24: #{tpu_custom_call.1} parent=11 // pred_fallthru
          _
        // Predicated region
        $region25: #{tpu_custom_call.1} parent=11 // pred_check
          %p299 = pneg %p134
        $region26: #{tpu_custom_call.1} parent=11 // pred_check_branch
          %301 = sbr.rel (%p299) target = $region28
        $region27: #{tpu_custom_call.1} parent=11 // pred_region
          %303 = vsyncadd [#allocation9], 0
          %s305 = sshll.u32 %s4, 4
          %s306 = int_to_ptr.hbm [resolvable:$true] %s305
          %s307 = sshll.u32 [#allocation10], 4
          %s308 = int_to_ptr.vmem [resolvable:$true] %s307
          %310 = dma.hbm_to_vmem [thread:$0]  %s306, 64, %s308, [#allocation9]
        $region28: #{tpu_custom_call.1} parent=11 // pred_fallthru
          _
        // Predicated region
        $region29: #{tpu_custom_call.1} parent=11 // pred_check
          %p311 = pneg %p155
        $region30: #{tpu_custom_call.1} parent=11 // pred_check_branch
          %313 = sbr.rel (%p311) target = $region32
        $region31: #{tpu_custom_call.1} parent=11 // pred_region
          %315 = vsyncadd [#allocation12], 0
          %s316 = sshll.u32 %s5, 4
          %s317 = int_to_ptr.hbm [resolvable:$true] %s316
          %s318 = sshll.u32 [#allocation11], 4
          %s319 = int_to_ptr.vmem [resolvable:$true] %s318
          %324 = dma.hbm_to_vmem [thread:$0]  %s317, 16384, %s319, [#allocation12], 256, 256, 16
        $region32: #{tpu_custom_call.1} parent=11 // pred_fallthru
          _
        // Predicated region
        $region33: #{tpu_custom_call.1} parent=11 // pred_check
          %p325 = pneg %p176
        $region34: #{tpu_custom_call.1} parent=11 // pred_check_branch
          %327 = sbr.rel (%p325) target = $region36
        $region35: #{tpu_custom_call.1} parent=11 // pred_region
          _
        $region36: #{tpu_custom_call.1} parent=11 // pred_fallthru
          _
        // Predicated region
        $region37: #{tpu_custom_call.1} parent=11 // pred_check
          %p328 = pneg %p197
        $region38: #{tpu_custom_call.1} parent=11 // pred_check_branch
          %330 = sbr.rel (%p328) target = $region40
        $region39: #{tpu_custom_call.1} parent=11 // pred_region
          %332 = vsyncadd [#allocation12], 0
          %s333 = sshll.u32 %s7, 4
          %s334 = int_to_ptr.hbm [resolvable:$true] %s333
          %s335 = sshll.u32 [#allocation13], 4
          %s336 = int_to_ptr.vmem [resolvable:$true] %s335
          %341 = dma.hbm_to_vmem [thread:$0]  %s334, 4096, %s336, [#allocation12], 64, 64, 4
        $region40: #{tpu_custom_call.1} parent=11 // pred_fallthru
          _
        // Predicated region
        $region41: #{tpu_custom_call.1} parent=11 // pred_check
          %p342 = pneg %p218
        $region42: #{tpu_custom_call.1} parent=11 // pred_check_branch
          %344 = sbr.rel (%p342) target = $region44
        $region43: #{tpu_custom_call.1} parent=11 // pred_region
          _
        $region44: #{tpu_custom_call.1} parent=11 // pred_fallthru
          _
      $region12: #{tpu_custom_call.1} parent=5 // pred_fallthru
        _
      %p345 = scmp.lt.s32.totalorder %s24, 2
      // Predicated region
      $region45: #{tpu_custom_call.1} parent=5 // pred_check
        %p346 = pneg %p345
      $region46: #{tpu_custom_call.1} parent=5 // pred_check_branch
        %348 = sbr.rel (%p346) target = $region48
      $region47: #{tpu_custom_call.1} parent=5 // pred_region
        // Predicated region
        $region49: #{tpu_custom_call.1} parent=47 // pred_check
          %p349 = pneg %p44
        $region50: #{tpu_custom_call.1} parent=47 // pred_check_branch
          %351 = sbr.rel (%p349) target = $region52
        $region51: #{tpu_custom_call.1} parent=47 // pred_region
          %s352 = sand.u32 %s34, 1
          %s353 = scalar_lea.sflag [#allocation3], %s352
          %s354 = sand.u32 %s34, 1
          %s355 = smul.addr %s354, 16
          %s356 = scalar_lea.vmem [#allocation2], %s355
          %s357 = smul.u32 4, %s24
          %359 = vsyncadd %s353, 0
          %s360 = smul.addr %s357, 4
          %s361 = scalar_lea.hbm %s0, %s360
          %s362 = sshll.u32 %s361, 4
          %s363 = int_to_ptr.hbm [resolvable:$true] %s362
          %s364 = sshll.u32 %s356, 4
          %s365 = int_to_ptr.vmem [resolvable:$true] %s364
          %370 = dma.hbm_to_vmem [thread:$0]  %s363, 256, %s365, %s353, 64, 64, 4
        $region52: #{tpu_custom_call.1} parent=47 // pred_fallthru
          _
      $region48: #{tpu_custom_call.1} parent=5 // pred_fallthru
        _
      %p371 = scmp.le.s32.totalorder 1, %s24
      %p372 = scmp.lt.s32.totalorder %s24, 3
      %p373 = pnand %p371, %p372
      %p374 = pneg %p373
      // Predicated region
      $region53: #{tpu_custom_call.1} parent=5 // pred_check
        _
      $region54: #{tpu_custom_call.1} parent=5 // pred_check_branch
        %376 = sbr.rel (%p373) target = $region56
      $region55: #{tpu_custom_call.1} parent=5 // pred_region
        %s377 = ssub.s32 %s24, 1
        %s378 = sand.u32 %s37, 1
        %s379 = scalar_lea.sflag [#allocation3], %s378
        %s380 = sand.u32 %s37, 1
        %s381 = smul.addr %s380, 16
        %s382 = scalar_lea.vmem [#allocation2], %s381
        // Predicated region
        $region57: #{tpu_custom_call.1} parent=55 // pred_check
          %p383 = pneg %p50
        $region58: #{tpu_custom_call.1} parent=55 // pred_check_branch
          %385 = sbr.rel (%p383) target = $region60
        $region59: #{tpu_custom_call.1} parent=55 // pred_region
          %387 = dma.done %s379, 256
        $region60: #{tpu_custom_call.1} parent=55 // pred_fallthru
          _
        // Predicated region
        $region61: #{tpu_custom_call.1} parent=55 // pred_check
          %p388 = pneg %p71
        $region62: #{tpu_custom_call.1} parent=55 // pred_check_branch
          %390 = sbr.rel (%p388) target = $region64
        $region63: #{tpu_custom_call.1} parent=55 // pred_region
          %392 = dma.done [#allocation6], 4096
        $region64: #{tpu_custom_call.1} parent=55 // pred_fallthru
          _
        // Predicated region
        $region65: #{tpu_custom_call.1} parent=55 // pred_check
          %p393 = pneg %p92
        $region66: #{tpu_custom_call.1} parent=55 // pred_check_branch
          %395 = sbr.rel (%p393) target = $region68
        $region67: #{tpu_custom_call.1} parent=55 // pred_region
          %397 = dma.done [#allocation6], 64
        $region68: #{tpu_custom_call.1} parent=55 // pred_fallthru
          _
        // Predicated region
        $region69: #{tpu_custom_call.1} parent=55 // pred_check
          %p398 = pneg %p113
        $region70: #{tpu_custom_call.1} parent=55 // pred_check_branch
          %400 = sbr.rel (%p398) target = $region72
        $region71: #{tpu_custom_call.1} parent=55 // pred_region
          %402 = dma.done [#allocation9], 16384
        $region72: #{tpu_custom_call.1} parent=55 // pred_fallthru
          _
        // Predicated region
        $region73: #{tpu_custom_call.1} parent=55 // pred_check
          %p403 = pneg %p134
        $region74: #{tpu_custom_call.1} parent=55 // pred_check_branch
          %405 = sbr.rel (%p403) target = $region76
        $region75: #{tpu_custom_call.1} parent=55 // pred_region
          %407 = dma.done [#allocation9], 64
        $region76: #{tpu_custom_call.1} parent=55 // pred_fallthru
          _
        // Predicated region
        $region77: #{tpu_custom_call.1} parent=55 // pred_check
          %p408 = pneg %p155
        $region78: #{tpu_custom_call.1} parent=55 // pred_check_branch
          %410 = sbr.rel (%p408) target = $region80
        $region79: #{tpu_custom_call.1} parent=55 // pred_region
          %412 = dma.done [#allocation12], 16384
        $region80: #{tpu_custom_call.1} parent=55 // pred_fallthru
          _
        // Predicated region
        $region81: #{tpu_custom_call.1} parent=55 // pred_check
          %p413 = pneg %p197
        $region82: #{tpu_custom_call.1} parent=55 // pred_check_branch
          %415 = sbr.rel (%p413) target = $region84
        $region83: #{tpu_custom_call.1} parent=55 // pred_region
          %417 = dma.done [#allocation12], 4096
        $region84: #{tpu_custom_call.1} parent=55 // pred_fallthru
          _
        %s418 = sand.u32 %s37, 1
        %s419 = scalar_lea.sflag [#allocation3], %s418
        %s420 = sand.u32 %s37, 1
        %s421 = smul.addr %s420, 16
        %s422 = scalar_lea.vmem [#allocation2], %s421
        %p423 = pneg %p50
        %p424 = pneg %p47
        %p425 = pneg %p71
        %p426 = pneg %p68
        %p427 = pneg %p92
        %p428 = pneg %p89
        %p429 = pneg %p113
        %p430 = pneg %p110
        %p431 = pneg %p134
        %p432 = pneg %p131
        %p433 = pneg %p155
        %p434 = pneg %p152
        %p435 = pneg %p176
        %p436 = pneg %p173
        %p437 = pneg %p197
        %p438 = pneg %p194
        %p439 = pneg %p218
        %p440 = pneg %p215
        %p441 = pneg %p244
        %p442 = pneg %p241
        %s443 = sand.u32 %s231, 1
        %s444 = scalar_lea.sflag [#allocation4], %s443
        %s445 = sand.u32 %s231, 1
        %s446 = smul.addr %s445, 32
        %s447 = scalar_lea.vmem [#allocation14], %s446
        %s448 = smul.u32 4, %s29
        %s449 = smul.u32 4, %s29
        %v450 = vld [vmem:[%s382] sm:$0xf]
        %v451 = vld [vmem:[%s382 + $0x4] sm:$0xf]
        %v452 = vld [vmem:[%s382 + $0x8] sm:$0xf]
        %v453 = vld [vmem:[%s382 + $0xc] sm:$0xf]
        %v454 = vld [vmem:[#allocation5] sm:$0xff]
        %v455 = vld [vmem:[#allocation5 + $0x8] sm:$0xff]
        %v456 = vld [vmem:[#allocation5 + $0x10] sm:$0xff]
        %v457 = vld [vmem:[#allocation5 + $0x18] sm:$0xff]
        %v458 = vld [vmem:[#allocation5 + $0x20] sm:$0xff]
        %v459 = vld [vmem:[#allocation5 + $0x28] sm:$0xff]
        %v460 = vld [vmem:[#allocation5 + $0x30] sm:$0xff]
        %v461 = vld [vmem:[#allocation5 + $0x38] sm:$0xff]
        %v462 = vld [vmem:[#allocation5 + $0x40] sm:$0xff]
        %v463 = vld [vmem:[#allocation5 + $0x48] sm:$0xff]
        %v464 = vld [vmem:[#allocation5 + $0x50] sm:$0xff]
        %v465 = vld [vmem:[#allocation5 + $0x58] sm:$0xff]
        %v466 = vld [vmem:[#allocation5 + $0x60] sm:$0xff]
        %v467 = vld [vmem:[#allocation5 + $0x68] sm:$0xff]
        %v468 = vld [vmem:[#allocation5 + $0x70] sm:$0xff]
        %v469 = vld [vmem:[#allocation5 + $0x78] sm:$0xff]
        %v470 = vld [vmem:[#allocation5 + $0x80] sm:$0xff]
        %v471 = vld [vmem:[#allocation5 + $0x88] sm:$0xff]
        %v472 = vld [vmem:[#allocation5 + $0x90] sm:$0xff]
        %v473 = vld [vmem:[#allocation5 + $0x98] sm:$0xff]
        %v474 = vld [vmem:[#allocation5 + $0xa0] sm:$0xff]
        %v475 = vld [vmem:[#allocation5 + $0xa8] sm:$0xff]
        %v476 = vld [vmem:[#allocation5 + $0xb0] sm:$0xff]
        %v477 = vld [vmem:[#allocation5 + $0xb8] sm:$0xff]
        %v478 = vld [vmem:[#allocation5 + $0xc0] sm:$0xff]
        %v479 = vld [vmem:[#allocation5 + $0xc8] sm:$0xff]
        %v480 = vld [vmem:[#allocation5 + $0xd0] sm:$0xff]
        %v481 = vld [vmem:[#allocation5 + $0xd8] sm:$0xff]
        %v482 = vld [vmem:[#allocation5 + $0xe0] sm:$0xff]
        %v483 = vld [vmem:[#allocation5 + $0xe8] sm:$0xff]
        %v484 = vld [vmem:[#allocation5 + $0xf0] sm:$0xff]
        %v485 = vld [vmem:[#allocation5 + $0xf8] sm:$0xff]
        %v486 = vld [vmem:[#allocation7] sm:$0xf]
        %v488 = vperm.slane %v486, 0
        %v489 = vperm.slane %v486, 1
        %v490 = vperm.slane %v486, 2
        %v491 = vperm.slane %v486, 3
        %v500 = vunpack.c.l.b16 %v450
        %v501 = vunpack.c.l.b16 %v451
        %v502 = vunpack.c.l.b16 %v452
        %v503 = vunpack.c.l.b16 %v453
        %v504 = vpack.c.b16 %v501, %v500
        %v505 = vpack.c.b16 %v503, %v502
        %v540 = vunpack.c.l.b16 %v454
        %v541 = vunpack.c.h.b16 %v454
        %v542 = vunpack.c.l.b16 %v455
        %v543 = vunpack.c.h.b16 %v455
        %v544 = vunpack.c.l.b16 %v456
        %v545 = vunpack.c.h.b16 %v456
        %v546 = vunpack.c.l.b16 %v457
        %v547 = vunpack.c.h.b16 %v457
        %v548 = vunpack.c.l.b16 %v458
        %v549 = vunpack.c.h.b16 %v458
        %v550 = vunpack.c.l.b16 %v459
        %v551 = vunpack.c.h.b16 %v459
        %v552 = vunpack.c.l.b16 %v460
        %v553 = vunpack.c.h.b16 %v460
        %v554 = vunpack.c.l.b16 %v461
        %v555 = vunpack.c.h.b16 %v461
        %v556 = vunpack.c.l.b16 %v462
        %v557 = vunpack.c.h.b16 %v462
        %v558 = vunpack.c.l.b16 %v463
        %v559 = vunpack.c.h.b16 %v463
        %v560 = vunpack.c.l.b16 %v464
        %v561 = vunpack.c.h.b16 %v464
        %v562 = vunpack.c.l.b16 %v465
        %v563 = vunpack.c.h.b16 %v465
        %v564 = vunpack.c.l.b16 %v466
        %v565 = vunpack.c.h.b16 %v466
        %v566 = vunpack.c.l.b16 %v467
        %v567 = vunpack.c.h.b16 %v467
        %v568 = vunpack.c.l.b16 %v468
        %v569 = vunpack.c.h.b16 %v468
        %v570 = vunpack.c.l.b16 %v469
        %v571 = vunpack.c.h.b16 %v469
        %v572 = vunpack.c.l.b16 %v470
        %v573 = vunpack.c.h.b16 %v470
        %v574 = vunpack.c.l.b16 %v471
        %v575 = vunpack.c.h.b16 %v471
        %v576 = vunpack.c.l.b16 %v472
        %v577 = vunpack.c.h.b16 %v472
        %v578 = vunpack.c.l.b16 %v473
        %v579 = vunpack.c.h.b16 %v473
        %v580 = vunpack.c.l.b16 %v474
        %v581 = vunpack.c.h.b16 %v474
        %v582 = vunpack.c.l.b16 %v475
        %v583 = vunpack.c.h.b16 %v475
        %v584 = vunpack.c.l.b16 %v476
        %v585 = vunpack.c.h.b16 %v476
        %v586 = vunpack.c.l.b16 %v477
        %v587 = vunpack.c.h.b16 %v477
        %v588 = vunpack.c.l.b16 %v478
        %v589 = vunpack.c.h.b16 %v478
        %v590 = vunpack.c.l.b16 %v479
        %v591 = vunpack.c.h.b16 %v479
        %v592 = vunpack.c.l.b16 %v480
        %v593 = vunpack.c.h.b16 %v480
        %v594 = vunpack.c.l.b16 %v481
        %v595 = vunpack.c.h.b16 %v481
        %v596 = vunpack.c.l.b16 %v482
        %v597 = vunpack.c.h.b16 %v482
        %v598 = vunpack.c.l.b16 %v483
        %v599 = vunpack.c.h.b16 %v483
        %v600 = vunpack.c.l.b16 %v484
        %v601 = vunpack.c.h.b16 %v484
        %v602 = vunpack.c.l.b16 %v485
        %v603 = vunpack.c.h.b16 %v485
        %v604 = vpack.c.b16 %v544, %v540
        %v605 = vpack.c.b16 %v545, %v541
        %v606 = vpack.c.b16 %v546, %v542
        %v607 = vpack.c.b16 %v547, %v543
        %v608 = vpack.c.b16 %v552, %v548
        %v609 = vpack.c.b16 %v553, %v549
        %v610 = vpack.c.b16 %v554, %v550
        %v611 = vpack.c.b16 %v555, %v551
        %v612 = vpack.c.b16 %v560, %v556
        %v613 = vpack.c.b16 %v561, %v557
        %v614 = vpack.c.b16 %v562, %v558
        %v615 = vpack.c.b16 %v563, %v559
        %v616 = vpack.c.b16 %v568, %v564
        %v617 = vpack.c.b16 %v569, %v565
        %v618 = vpack.c.b16 %v570, %v566
        %v619 = vpack.c.b16 %v571, %v567
        %v620 = vpack.c.b16 %v576, %v572
        %v621 = vpack.c.b16 %v577, %v573
        %v622 = vpack.c.b16 %v578, %v574
        %v623 = vpack.c.b16 %v579, %v575
        %v624 = vpack.c.b16 %v584, %v580
        %v625 = vpack.c.b16 %v585, %v581
        %v626 = vpack.c.b16 %v586, %v582
        %v627 = vpack.c.b16 %v587, %v583
        %v628 = vpack.c.b16 %v592, %v588
        %v629 = vpack.c.b16 %v593, %v589
        %v630 = vpack.c.b16 %v594, %v590
        %v631 = vpack.c.b16 %v595, %v591
        %v632 = vpack.c.b16 %v600, %v596
        %v633 = vpack.c.b16 %v601, %v597
        %v634 = vpack.c.b16 %v602, %v598
        %v635 = vpack.c.b16 %v603, %v599
        %668 = vmatpush.bf16.msra.mxu0 %v632
        %669 = vmatpush.bf16.msra.mxu0 %v628
        %670 = vmatpush.bf16.msra.mxu0 %v624
        %671 = vmatpush.bf16.msra.mxu0 %v620
        %672 = vmatpush.bf16.msra.mxu0 %v616
        %673 = vmatpush.bf16.msra.mxu0 %v612
        %674 = vmatpush.bf16.msra.mxu0 %v608
        %675 = vmatpush.bf16.msra.mxu0 %v604
        %676 = vmatmul.bf16.gmra.mxu0 %v504
        %v677 = vpop.f32.mrf.mxu0
        %v678 = vadd.f32 %v488, %v677
        %v679 = vpop.f32.mrf.mxu0
        %v680 = vadd.f32 %v488, %v679
        %681 = vmatmul.bf16.gmra.mxu0 %v505
        %v682 = vpop.f32.mrf.mxu0
        %v683 = vadd.f32 %v488, %v682
        %v684 = vpop.f32.mrf.mxu0
        %v685 = vadd.f32 %v488, %v684
        %686 = vdwg.mxu0
        %687 = vmatpush.bf16.msra.mxu0 %v633
        %688 = vmatpush.bf16.msra.mxu0 %v629
        %689 = vmatpush.bf16.msra.mxu0 %v625
        %690 = vmatpush.bf16.msra.mxu0 %v621
        %691 = vmatpush.bf16.msra.mxu0 %v617
        %692 = vmatpush.bf16.msra.mxu0 %v613
        %693 = vmatpush.bf16.msra.mxu0 %v609
        %694 = vmatpush.bf16.msra.mxu0 %v605
        %695 = vmatmul.bf16.gmra.mxu0 %v504
        %v696 = vpop.f32.mrf.mxu0
        %v697 = vadd.f32 %v489, %v696
        %v698 = vpop.f32.mrf.mxu0
        %v699 = vadd.f32 %v489, %v698
        %700 = vmatmul.bf16.gmra.mxu0 %v505
        %v701 = vpop.f32.mrf.mxu0
        %v702 = vadd.f32 %v489, %v701
        %v703 = vpop.f32.mrf.mxu0
        %v704 = vadd.f32 %v489, %v703
        %705 = vdwg.mxu0
        %706 = vmatpush.bf16.msra.mxu0 %v634
        %707 = vmatpush.bf16.msra.mxu0 %v630
        %708 = vmatpush.bf16.msra.mxu0 %v626
        %709 = vmatpush.bf16.msra.mxu0 %v622
        %710 = vmatpush.bf16.msra.mxu0 %v618
        %711 = vmatpush.bf16.msra.mxu0 %v614
        %712 = vmatpush.bf16.msra.mxu0 %v610
        %713 = vmatpush.bf16.msra.mxu0 %v606
        %714 = vmatmul.bf16.gmra.mxu0 %v504
        %v715 = vpop.f32.mrf.mxu0
        %v716 = vadd.f32 %v490, %v715
        %v717 = vpop.f32.mrf.mxu0
        %v718 = vadd.f32 %v490, %v717
        %719 = vmatmul.bf16.gmra.mxu0 %v505
        %v720 = vpop.f32.mrf.mxu0
        %v721 = vadd.f32 %v490, %v720
        %v722 = vpop.f32.mrf.mxu0
        %v723 = vadd.f32 %v490, %v722
        %724 = vdwg.mxu0
        %725 = vmatpush.bf16.msra.mxu0 %v635
        %726 = vmatpush.bf16.msra.mxu0 %v631
        %727 = vmatpush.bf16.msra.mxu0 %v627
        %728 = vmatpush.bf16.msra.mxu0 %v623
        %729 = vmatpush.bf16.msra.mxu0 %v619
        %730 = vmatpush.bf16.msra.mxu0 %v615
        %731 = vmatpush.bf16.msra.mxu0 %v611
        %732 = vmatpush.bf16.msra.mxu0 %v607
        %733 = vmatmul.bf16.gmra.mxu0 %v504
        %v734 = vpop.f32.mrf.mxu0
        %v735 = vadd.f32 %v491, %v734
        %v736 = vpop.f32.mrf.mxu0
        %v737 = vadd.f32 %v491, %v736
        %738 = vmatmul.bf16.gmra.mxu0 %v505
        %v739 = vpop.f32.mrf.mxu0
        %v740 = vadd.f32 %v491, %v739
        %v741 = vpop.f32.mrf.mxu0
        %v742 = vadd.f32 %v491, %v741
        %743 = vdwg.mxu0
        %v744 = vmax.f32 %v678, 0.0
        %v745 = vmax.f32 %v697, 0.0
        %v746 = vmax.f32 %v716, 0.0
        %v747 = vmax.f32 %v735, 0.0
        %v748 = vmax.f32 %v680, 0.0
        %v749 = vmax.f32 %v699, 0.0
        %v750 = vmax.f32 %v718, 0.0
        %v751 = vmax.f32 %v737, 0.0
        %v752 = vmax.f32 %v683, 0.0
        %v753 = vmax.f32 %v702, 0.0
        %v754 = vmax.f32 %v721, 0.0
        %v755 = vmax.f32 %v740, 0.0
        %v756 = vmax.f32 %v685, 0.0
        %v757 = vmax.f32 %v704, 0.0
        %v758 = vmax.f32 %v723, 0.0
        %v759 = vmax.f32 %v742, 0.0
        %v760 = vpack.c.bf16 %v748, %v744
        %v761 = vpack.c.bf16 %v749, %v745
        %v762 = vpack.c.bf16 %v750, %v746
        %v763 = vpack.c.bf16 %v751, %v747
        %v764 = vpack.c.bf16 %v756, %v752
        %v765 = vpack.c.bf16 %v757, %v753
        %v766 = vpack.c.bf16 %v758, %v754
        %v767 = vpack.c.bf16 %v759, %v755
        %v768 = vld [vmem:[#allocation8] sm:$0xff]
        %v769 = vld [vmem:[#allocation8 + $0x8] sm:$0xff]
        %v770 = vld [vmem:[#allocation8 + $0x10] sm:$0xff]
        %v771 = vld [vmem:[#allocation8 + $0x18] sm:$0xff]
        %v772 = vld [vmem:[#allocation8 + $0x20] sm:$0xff]
        %v773 = vld [vmem:[#allocation8 + $0x28] sm:$0xff]
        %v774 = vld [vmem:[#allocation8 + $0x30] sm:$0xff]
        %v775 = vld [vmem:[#allocation8 + $0x38] sm:$0xff]
        %v776 = vld [vmem:[#allocation8 + $0x40] sm:$0xff]
        %v777 = vld [vmem:[#allocation8 + $0x48] sm:$0xff]
        %v778 = vld [vmem:[#allocation8 + $0x50] sm:$0xff]
        %v779 = vld [vmem:[#allocation8 + $0x58] sm:$0xff]
        %v780 = vld [vmem:[#allocation8 + $0x60] sm:$0xff]
        %v781 = vld [vmem:[#allocation8 + $0x68] sm:$0xff]
        %v782 = vld [vmem:[#allocation8 + $0x70] sm:$0xff]
        %v783 = vld [vmem:[#allocation8 + $0x78] sm:$0xff]
        %v784 = vld [vmem:[#allocation8 + $0x80] sm:$0xff]
        %v785 = vld [vmem:[#allocation8 + $0x88] sm:$0xff]
        %v786 = vld [vmem:[#allocation8 + $0x90] sm:$0xff]
        %v787 = vld [vmem:[#allocation8 + $0x98] sm:$0xff]
        %v788 = vld [vmem:[#allocation8 + $0xa0] sm:$0xff]
        %v789 = vld [vmem:[#allocation8 + $0xa8] sm:$0xff]
        %v790 = vld [vmem:[#allocation8 + $0xb0] sm:$0xff]
        %v791 = vld [vmem:[#allocation8 + $0xb8] sm:$0xff]
        %v792 = vld [vmem:[#allocation8 + $0xc0] sm:$0xff]
        %v793 = vld [vmem:[#allocation8 + $0xc8] sm:$0xff]
        %v794 = vld [vmem:[#allocation8 + $0xd0] sm:$0xff]
        %v795 = vld [vmem:[#allocation8 + $0xd8] sm:$0xff]
        %v796 = vld [vmem:[#allocation8 + $0xe0] sm:$0xff]
        %v797 = vld [vmem:[#allocation8 + $0xe8] sm:$0xff]
        %v798 = vld [vmem:[#allocation8 + $0xf0] sm:$0xff]
        %v799 = vld [vmem:[#allocation8 + $0xf8] sm:$0xff]
        %v800 = vld [vmem:[#allocation8 + $0x100] sm:$0xff]
        %v801 = vld [vmem:[#allocation8 + $0x108] sm:$0xff]
        %v802 = vld [vmem:[#allocation8 + $0x110] sm:$0xff]
        %v803 = vld [vmem:[#allocation8 + $0x118] sm:$0xff]
        %v804 = vld [vmem:[#allocation8 + $0x120] sm:$0xff]
        %v805 = vld [vmem:[#allocation8 + $0x128] sm:$0xff]
        %v806 = vld [vmem:[#allocation8 + $0x130] sm:$0xff]
        %v807 = vld [vmem:[#allocation8 + $0x138] sm:$0xff]
        %v808 = vld [vmem:[#allocation8 + $0x140] sm:$0xff]
        %v809 = vld [vmem:[#allocation8 + $0x148] sm:$0xff]
        %v810 = vld [vmem:[#allocation8 + $0x150] sm:$0xff]
        %v811 = vld [vmem:[#allocation8 + $0x158] sm:$0xff]
        %v812 = vld [vmem:[#allocation8 + $0x160] sm:$0xff]
        %v813 = vld [vmem:[#allocation8 + $0x168] sm:$0xff]
        %v814 = vld [vmem:[#allocation8 + $0x170] sm:$0xff]
        %v815 = vld [vmem:[#allocation8 + $0x178] sm:$0xff]
        %v816 = vld [vmem:[#allocation8 + $0x180] sm:$0xff]
        %v817 = vld [vmem:[#allocation8 + $0x188] sm:$0xff]
        %v818 = vld [vmem:[#allocation8 + $0x190] sm:$0xff]
        %v819 = vld [vmem:[#allocation8 + $0x198] sm:$0xff]
        %v820 = vld [vmem:[#allocation8 + $0x1a0] sm:$0xff]
        %v821 = vld [vmem:[#allocation8 + $0x1a8] sm:$0xff]
        %v822 = vld [vmem:[#allocation8 + $0x1b0] sm:$0xff]
        %v823 = vld [vmem:[#allocation8 + $0x1b8] sm:$0xff]
        %v824 = vld [vmem:[#allocation8 + $0x1c0] sm:$0xff]
        %v825 = vld [vmem:[#allocation8 + $0x1c8] sm:$0xff]
        %v826 = vld [vmem:[#allocation8 + $0x1d0] sm:$0xff]
        %v827 = vld [vmem:[#allocation8 + $0x1d8] sm:$0xff]
        %v828 = vld [vmem:[#allocation8 + $0x1e0] sm:$0xff]
        %v829 = vld [vmem:[#allocation8 + $0x1e8] sm:$0xff]
        %v830 = vld [vmem:[#allocation8 + $0x1f0] sm:$0xff]
        %v831 = vld [vmem:[#allocation8 + $0x1f8] sm:$0xff]
        %v832 = vld [vmem:[#allocation8 + $0x200] sm:$0xff]
        %v833 = vld [vmem:[#allocation8 + $0x208] sm:$0xff]
        %v834 = vld [vmem:[#allocation8 + $0x210] sm:$0xff]
        %v835 = vld [vmem:[#allocation8 + $0x218] sm:$0xff]
        %v836 = vld [vmem:[#allocation8 + $0x220] sm:$0xff]
        %v837 = vld [vmem:[#allocation8 + $0x228] sm:$0xff]
        %v838 = vld [vmem:[#allocation8 + $0x230] sm:$0xff]
        %v839 = vld [vmem:[#allocation8 + $0x238] sm:$0xff]
        %v840 = vld [vmem:[#allocation8 + $0x240] sm:$0xff]
        %v841 = vld [vmem:[#allocation8 + $0x248] sm:$0xff]
        %v842 = vld [vmem:[#allocation8 + $0x250] sm:$0xff]
        %v843 = vld [vmem:[#allocation8 + $0x258] sm:$0xff]
        %v844 = vld [vmem:[#allocation8 + $0x260] sm:$0xff]
        %v845 = vld [vmem:[#allocation8 + $0x268] sm:$0xff]
        %v846 = vld [vmem:[#allocation8 + $0x270] sm:$0xff]
        %v847 = vld [vmem:[#allocation8 + $0x278] sm:$0xff]
        %v848 = vld [vmem:[#allocation8 + $0x280] sm:$0xff]
        %v849 = vld [vmem:[#allocation8 + $0x288] sm:$0xff]
        %v850 = vld [vmem:[#allocation8 + $0x290] sm:$0xff]
        %v851 = vld [vmem:[#allocation8 + $0x298] sm:$0xff]
        %v852 = vld [vmem:[#allocation8 + $0x2a0] sm:$0xff]
        %v853 = vld [vmem:[#allocation8 + $0x2a8] sm:$0xff]
        %v854 = vld [vmem:[#allocation8 + $0x2b0] sm:$0xff]
        %v855 = vld [vmem:[#allocation8 + $0x2b8] sm:$0xff]
        %v856 = vld [vmem:[#allocation8 + $0x2c0] sm:$0xff]
        %v857 = vld [vmem:[#allocation8 + $0x2c8] sm:$0xff]
        %v858 = vld [vmem:[#allocation8 + $0x2d0] sm:$0xff]
        %v859 = vld [vmem:[#allocation8 + $0x2d8] sm:$0xff]
        %v860 = vld [vmem:[#allocation8 + $0x2e0] sm:$0xff]
        %v861 = vld [vmem:[#allocation8 + $0x2e8] sm:$0xff]
        %v862 = vld [vmem:[#allocation8 + $0x2f0] sm:$0xff]
        %v863 = vld [vmem:[#allocation8 + $0x2f8] sm:$0xff]
        %v864 = vld [vmem:[#allocation8 + $0x300] sm:$0xff]
        %v865 = vld [vmem:[#allocation8 + $0x308] sm:$0xff]
        %v866 = vld [vmem:[#allocation8 + $0x310] sm:$0xff]
        %v867 = vld [vmem:[#allocation8 + $0x318] sm:$0xff]
        %v868 = vld [vmem:[#allocation8 + $0x320] sm:$0xff]
        %v869 = vld [vmem:[#allocation8 + $0x328] sm:$0xff]
        %v870 = vld [vmem:[#allocation8 + $0x330] sm:$0xff]
        %v871 = vld [vmem:[#allocation8 + $0x338] sm:$0xff]
        %v872 = vld [vmem:[#allocation8 + $0x340] sm:$0xff]
        %v873 = vld [vmem:[#allocation8 + $0x348] sm:$0xff]
        %v874 = vld [vmem:[#allocation8 + $0x350] sm:$0xff]
        %v875 = vld [vmem:[#allocation8 + $0x358] sm:$0xff]
        %v876 = vld [vmem:[#allocation8 + $0x360] sm:$0xff]
        %v877 = vld [vmem:[#allocation8 + $0x368] sm:$0xff]
        %v878 = vld [vmem:[#allocation8 + $0x370] sm:$0xff]
        %v879 = vld [vmem:[#allocation8 + $0x378] sm:$0xff]
        %v880 = vld [vmem:[#allocation8 + $0x380] sm:$0xff]
        %v881 = vld [vmem:[#allocation8 + $0x388] sm:$0xff]
        %v882 = vld [vmem:[#allocation8 + $0x390] sm:$0xff]
        %v883 = vld [vmem:[#allocation8 + $0x398] sm:$0xff]
        %v884 = vld [vmem:[#allocation8 + $0x3a0] sm:$0xff]
        %v885 = vld [vmem:[#allocation8 + $0x3a8] sm:$0xff]
        %v886 = vld [vmem:[#allocation8 + $0x3b0] sm:$0xff]
        %v887 = vld [vmem:[#allocation8 + $0x3b8] sm:$0xff]
        %v888 = vld [vmem:[#allocation8 + $0x3c0] sm:$0xff]
        %v889 = vld [vmem:[#allocation8 + $0x3c8] sm:$0xff]
        %v890 = vld [vmem:[#allocation8 + $0x3d0] sm:$0xff]
        %v891 = vld [vmem:[#allocation8 + $0x3d8] sm:$0xff]
        %v892 = vld [vmem:[#allocation8 + $0x3e0] sm:$0xff]
        %v893 = vld [vmem:[#allocation8 + $0x3e8] sm:$0xff]
        %v894 = vld [vmem:[#allocation8 + $0x3f0] sm:$0xff]
        %v895 = vld [vmem:[#allocation8 + $0x3f8] sm:$0xff]
        %v896 = vld [vmem:[#allocation10] sm:$0xf]
        %v898 = vperm.slane %v896, 0
        %v899 = vperm.slane %v896, 1
        %v900 = vperm.slane %v896, 2
        %v901 = vperm.slane %v896, 3
        %v1034 = vunpack.c.l.b16 %v768
        %v1035 = vunpack.c.h.b16 %v768
        %v1036 = vunpack.c.l.b16 %v769
        %v1037 = vunpack.c.h.b16 %v769
        %v1038 = vunpack.c.l.b16 %v770
        %v1039 = vunpack.c.h.b16 %v770
        %v1040 = vunpack.c.l.b16 %v771
        %v1041 = vunpack.c.h.b16 %v771
        %v1042 = vunpack.c.l.b16 %v772
        %v1043 = vunpack.c.h.b16 %v772
        %v1044 = vunpack.c.l.b16 %v773
        %v1045 = vunpack.c.h.b16 %v773
        %v1046 = vunpack.c.l.b16 %v774
        %v1047 = vunpack.c.h.b16 %v774
        %v1048 = vunpack.c.l.b16 %v775
        %v1049 = vunpack.c.h.b16 %v775
        %v1050 = vunpack.c.l.b16 %v776
        %v1051 = vunpack.c.h.b16 %v776
        %v1052 = vunpack.c.l.b16 %v777
        %v1053 = vunpack.c.h.b16 %v777
        %v1054 = vunpack.c.l.b16 %v778
        %v1055 = vunpack.c.h.b16 %v778
        %v1056 = vunpack.c.l.b16 %v779
        %v1057 = vunpack.c.h.b16 %v779
        %v1058 = vunpack.c.l.b16 %v780
        %v1059 = vunpack.c.h.b16 %v780
        %v1060 = vunpack.c.l.b16 %v781
        %v1061 = vunpack.c.h.b16 %v781
        %v1062 = vunpack.c.l.b16 %v782
        %v1063 = vunpack.c.h.b16 %v782
        %v1064 = vunpack.c.l.b16 %v783
        %v1065 = vunpack.c.h.b16 %v783
        %v1066 = vunpack.c.l.b16 %v784
        %v1067 = vunpack.c.h.b16 %v784
        %v1068 = vunpack.c.l.b16 %v785
        %v1069 = vunpack.c.h.b16 %v785
        %v1070 = vunpack.c.l.b16 %v786
        %v1071 = vunpack.c.h.b16 %v786
        %v1072 = vunpack.c.l.b16 %v787
        %v1073 = vunpack.c.h.b16 %v787
        %v1074 = vunpack.c.l.b16 %v788
        %v1075 = vunpack.c.h.b16 %v788
        %v1076 = vunpack.c.l.b16 %v789
        %v1077 = vunpack.c.h.b16 %v789
        %v1078 = vunpack.c.l.b16 %v790
        %v1079 = vunpack.c.h.b16 %v790
        %v1080 = vunpack.c.l.b16 %v791
        %v1081 = vunpack.c.h.b16 %v791
        %v1082 = vunpack.c.l.b16 %v792
        %v1083 = vunpack.c.h.b16 %v792
        %v1084 = vunpack.c.l.b16 %v793
        %v1085 = vunpack.c.h.b16 %v793
        %v1086 = vunpack.c.l.b16 %v794
        %v1087 = vunpack.c.h.b16 %v794
        %v1088 = vunpack.c.l.b16 %v795
        %v1089 = vunpack.c.h.b16 %v795
        %v1090 = vunpack.c.l.b16 %v796
        %v1091 = vunpack.c.h.b16 %v796
        %v1092 = vunpack.c.l.b16 %v797
        %v1093 = vunpack.c.h.b16 %v797
        %v1094 = vunpack.c.l.b16 %v798
        %v1095 = vunpack.c.h.b16 %v798
        %v1096 = vunpack.c.l.b16 %v799
        %v1097 = vunpack.c.h.b16 %v799
        %v1098 = vunpack.c.l.b16 %v800
        %v1099 = vunpack.c.h.b16 %v800
        %v1100 = vunpack.c.l.b16 %v801
        %v1101 = vunpack.c.h.b16 %v801
        %v1102 = vunpack.c.l.b16 %v802
        %v1103 = vunpack.c.h.b16 %v802
        %v1104 = vunpack.c.l.b16 %v803
        %v1105 = vunpack.c.h.b16 %v803
        %v1106 = vunpack.c.l.b16 %v804
        %v1107 = vunpack.c.h.b16 %v804
        %v1108 = vunpack.c.l.b16 %v805
        %v1109 = vunpack.c.h.b16 %v805
        %v1110 = vunpack.c.l.b16 %v806
        %v1111 = vunpack.c.h.b16 %v806
        %v1112 = vunpack.c.l.b16 %v807
        %v1113 = vunpack.c.h.b16 %v807
        %v1114 = vunpack.c.l.b16 %v808
        %v1115 = vunpack.c.h.b16 %v808
        %v1116 = vunpack.c.l.b16 %v809
        %v1117 = vunpack.c.h.b16 %v809
        %v1118 = vunpack.c.l.b16 %v810
        %v1119 = vunpack.c.h.b16 %v810
        %v1120 = vunpack.c.l.b16 %v811
        %v1121 = vunpack.c.h.b16 %v811
        %v1122 = vunpack.c.l.b16 %v812
        %v1123 = vunpack.c.h.b16 %v812
        %v1124 = vunpack.c.l.b16 %v813
        %v1125 = vunpack.c.h.b16 %v813
        %v1126 = vunpack.c.l.b16 %v814
        %v1127 = vunpack.c.h.b16 %v814
        %v1128 = vunpack.c.l.b16 %v815
        %v1129 = vunpack.c.h.b16 %v815
        %v1130 = vunpack.c.l.b16 %v816
        %v1131 = vunpack.c.h.b16 %v816
        %v1132 = vunpack.c.l.b16 %v817
        %v1133 = vunpack.c.h.b16 %v817
        %v1134 = vunpack.c.l.b16 %v818
        %v1135 = vunpack.c.h.b16 %v818
        %v1136 = vunpack.c.l.b16 %v819
        %v1137 = vunpack.c.h.b16 %v819
        %v1138 = vunpack.c.l.b16 %v820
        %v1139 = vunpack.c.h.b16 %v820
        %v1140 = vunpack.c.l.b16 %v821
        %v1141 = vunpack.c.h.b16 %v821
        %v1142 = vunpack.c.l.b16 %v822
        %v1143 = vunpack.c.h.b16 %v822
        %v1144 = vunpack.c.l.b16 %v823
        %v1145 = vunpack.c.h.b16 %v823
        %v1146 = vunpack.c.l.b16 %v824
        %v1147 = vunpack.c.h.b16 %v824
        %v1148 = vunpack.c.l.b16 %v825
        %v1149 = vunpack.c.h.b16 %v825
        %v1150 = vunpack.c.l.b16 %v826
        %v1151 = vunpack.c.h.b16 %v826
        %v1152 = vunpack.c.l.b16 %v827
        %v1153 = vunpack.c.h.b16 %v827
        %v1154 = vunpack.c.l.b16 %v828
        %v1155 = vunpack.c.h.b16 %v828
        %v1156 = vunpack.c.l.b16 %v829
        %v1157 = vunpack.c.h.b16 %v829
        %v1158 = vunpack.c.l.b16 %v830
        %v1159 = vunpack.c.h.b16 %v830
        %v1160 = vunpack.c.l.b16 %v831
        %v1161 = vunpack.c.h.b16 %v831
        %v1162 = vunpack.c.l.b16 %v832
        %v1163 = vunpack.c.h.b16 %v832
        %v1164 = vunpack.c.l.b16 %v833
        %v1165 = vunpack.c.h.b16 %v833
        %v1166 = vunpack.c.l.b16 %v834
        %v1167 = vunpack.c.h.b16 %v834
        %v1168 = vunpack.c.l.b16 %v835
        %v1169 = vunpack.c.h.b16 %v835
        %v1170 = vunpack.c.l.b16 %v836
        %v1171 = vunpack.c.h.b16 %v836
        %v1172 = vunpack.c.l.b16 %v837
        %v1173 = vunpack.c.h.b16 %v837
        %v1174 = vunpack.c.l.b16 %v838
        %v1175 = vunpack.c.h.b16 %v838
        %v1176 = vunpack.c.l.b16 %v839
        %v1177 = vunpack.c.h.b16 %v839
        %v1178 = vunpack.c.l.b16 %v840
        %v1179 = vunpack.c.h.b16 %v840
        %v1180 = vunpack.c.l.b16 %v841
        %v1181 = vunpack.c.h.b16 %v841
        %v1182 = vunpack.c.l.b16 %v842
        %v1183 = vunpack.c.h.b16 %v842
        %v1184 = vunpack.c.l.b16 %v843
        %v1185 = vunpack.c.h.b16 %v843
        %v1186 = vunpack.c.l.b16 %v844
        %v1187 = vunpack.c.h.b16 %v844
        %v1188 = vunpack.c.l.b16 %v845
        %v1189 = vunpack.c.h.b16 %v845
        %v1190 = vunpack.c.l.b16 %v846
        %v1191 = vunpack.c.h.b16 %v846
        %v1192 = vunpack.c.l.b16 %v847
        %v1193 = vunpack.c.h.b16 %v847
        %v1194 = vunpack.c.l.b16 %v848
        %v1195 = vunpack.c.h.b16 %v848
        %v1196 = vunpack.c.l.b16 %v849
        %v1197 = vunpack.c.h.b16 %v849
        %v1198 = vunpack.c.l.b16 %v850
        %v1199 = vunpack.c.h.b16 %v850
        %v1200 = vunpack.c.l.b16 %v851
        %v1201 = vunpack.c.h.b16 %v851
        %v1202 = vunpack.c.l.b16 %v852
        %v1203 = vunpack.c.h.b16 %v852
        %v1204 = vunpack.c.l.b16 %v853
        %v1205 = vunpack.c.h.b16 %v853
        %v1206 = vunpack.c.l.b16 %v854
        %v1207 = vunpack.c.h.b16 %v854
        %v1208 = vunpack.c.l.b16 %v855
        %v1209 = vunpack.c.h.b16 %v855
        %v1210 = vunpack.c.l.b16 %v856
        %v1211 = vunpack.c.h.b16 %v856
        %v1212 = vunpack.c.l.b16 %v857
        %v1213 = vunpack.c.h.b16 %v857
        %v1214 = vunpack.c.l.b16 %v858
        %v1215 = vunpack.c.h.b16 %v858
        %v1216 = vunpack.c.l.b16 %v859
        %v1217 = vunpack.c.h.b16 %v859
        %v1218 = vunpack.c.l.b16 %v860
        %v1219 = vunpack.c.h.b16 %v860
        %v1220 = vunpack.c.l.b16 %v861
        %v1221 = vunpack.c.h.b16 %v861
        %v1222 = vunpack.c.l.b16 %v862
        %v1223 = vunpack.c.h.b16 %v862
        %v1224 = vunpack.c.l.b16 %v863
        %v1225 = vunpack.c.h.b16 %v863
        %v1226 = vunpack.c.l.b16 %v864
        %v1227 = vunpack.c.h.b16 %v864
        %v1228 = vunpack.c.l.b16 %v865
        %v1229 = vunpack.c.h.b16 %v865
        %v1230 = vunpack.c.l.b16 %v866
        %v1231 = vunpack.c.h.b16 %v866
        %v1232 = vunpack.c.l.b16 %v867
        %v1233 = vunpack.c.h.b16 %v867
        %v1234 = vunpack.c.l.b16 %v868
        %v1235 = vunpack.c.h.b16 %v868
        %v1236 = vunpack.c.l.b16 %v869
        %v1237 = vunpack.c.h.b16 %v869
        %v1238 = vunpack.c.l.b16 %v870
        %v1239 = vunpack.c.h.b16 %v870
        %v1240 = vunpack.c.l.b16 %v871
        %v1241 = vunpack.c.h.b16 %v871
        %v1242 = vunpack.c.l.b16 %v872
        %v1243 = vunpack.c.h.b16 %v872
        %v1244 = vunpack.c.l.b16 %v873
        %v1245 = vunpack.c.h.b16 %v873
        %v1246 = vunpack.c.l.b16 %v874
        %v1247 = vunpack.c.h.b16 %v874
        %v1248 = vunpack.c.l.b16 %v875
        %v1249 = vunpack.c.h.b16 %v875
        %v1250 = vunpack.c.l.b16 %v876
        %v1251 = vunpack.c.h.b16 %v876
        %v1252 = vunpack.c.l.b16 %v877
        %v1253 = vunpack.c.h.b16 %v877
        %v1254 = vunpack.c.l.b16 %v878
        %v1255 = vunpack.c.h.b16 %v878
        %v1256 = vunpack.c.l.b16 %v879
        %v1257 = vunpack.c.h.b16 %v879
        %v1258 = vunpack.c.l.b16 %v880
        %v1259 = vunpack.c.h.b16 %v880
        %v1260 = vunpack.c.l.b16 %v881
        %v1261 = vunpack.c.h.b16 %v881
        %v1262 = vunpack.c.l.b16 %v882
        %v1263 = vunpack.c.h.b16 %v882
        %v1264 = vunpack.c.l.b16 %v883
        %v1265 = vunpack.c.h.b16 %v883
        %v1266 = vunpack.c.l.b16 %v884
        %v1267 = vunpack.c.h.b16 %v884
        %v1268 = vunpack.c.l.b16 %v885
        %v1269 = vunpack.c.h.b16 %v885
        %v1270 = vunpack.c.l.b16 %v886
        %v1271 = vunpack.c.h.b16 %v886
        %v1272 = vunpack.c.l.b16 %v887
        %v1273 = vunpack.c.h.b16 %v887
        %v1274 = vunpack.c.l.b16 %v888
        %v1275 = vunpack.c.h.b16 %v888
        %v1276 = vunpack.c.l.b16 %v889
        %v1277 = vunpack.c.h.b16 %v889
        %v1278 = vunpack.c.l.b16 %v890
        %v1279 = vunpack.c.h.b16 %v890
        %v1280 = vunpack.c.l.b16 %v891
        %v1281 = vunpack.c.h.b16 %v891
        %v1282 = vunpack.c.l.b16 %v892
        %v1283 = vunpack.c.h.b16 %v892
        %v1284 = vunpack.c.l.b16 %v893
        %v1285 = vunpack.c.h.b16 %v893
        %v1286 = vunpack.c.l.b16 %v894
        %v1287 = vunpack.c.h.b16 %v894
        %v1288 = vunpack.c.l.b16 %v895
        %v1289 = vunpack.c.h.b16 %v895
        %v1290 = vpack.c.b16 %v1038, %v1034
        %v1291 = vpack.c.b16 %v1039, %v1035
        %v1292 = vpack.c.b16 %v1040, %v1036
        %v1293 = vpack.c.b16 %v1041, %v1037
        %v1294 = vpack.c.b16 %v1046, %v1042
        %v1295 = vpack.c.b16 %v1047, %v1043
        %v1296 = vpack.c.b16 %v1048, %v1044
        %v1297 = vpack.c.b16 %v1049, %v1045
        %v1298 = vpack.c.b16 %v1054, %v1050
        %v1299 = vpack.c.b16 %v1055, %v1051
        %v1300 = vpack.c.b16 %v1056, %v1052
        %v1301 = vpack.c.b16 %v1057, %v1053
        %v1302 = vpack.c.b16 %v1062, %v1058
        %v1303 = vpack.c.b16 %v1063, %v1059
        %v1304 = vpack.c.b16 %v1064, %v1060
        %v1305 = vpack.c.b16 %v1065, %v1061
        %v1306 = vpack.c.b16 %v1070, %v1066
        %v1307 = vpack.c.b16 %v1071, %v1067
        %v1308 = vpack.c.b16 %v1072, %v1068
        %v1309 = vpack.c.b16 %v1073, %v1069
        %v1310 = vpack.c.b16 %v1078, %v1074
        %v1311 = vpack.c.b16 %v1079, %v1075
        %v1312 = vpack.c.b16 %v1080, %v1076
        %v1313 = vpack.c.b16 %v1081, %v1077
        %v1314 = vpack.c.b16 %v1086, %v1082
        %v1315 = vpack.c.b16 %v1087, %v1083
        %v1316 = vpack.c.b16 %v1088, %v1084
        %v1317 = vpack.c.b16 %v1089, %v1085
        %v1318 = vpack.c.b16 %v1094, %v1090
        %v1319 = vpack.c.b16 %v1095, %v1091
        %v1320 = vpack.c.b16 %v1096, %v1092
        %v1321 = vpack.c.b16 %v1097, %v1093
        %v1322 = vpack.c.b16 %v1102, %v1098
        %v1323 = vpack.c.b16 %v1103, %v1099
        %v1324 = vpack.c.b16 %v1104, %v1100
        %v1325 = vpack.c.b16 %v1105, %v1101
        %v1326 = vpack.c.b16 %v1110, %v1106
        %v1327 = vpack.c.b16 %v1111, %v1107
        %v1328 = vpack.c.b16 %v1112, %v1108
        %v1329 = vpack.c.b16 %v1113, %v1109
        %v1330 = vpack.c.b16 %v1118, %v1114
        %v1331 = vpack.c.b16 %v1119, %v1115
        %v1332 = vpack.c.b16 %v1120, %v1116
        %v1333 = vpack.c.b16 %v1121, %v1117
        %v1334 = vpack.c.b16 %v1126, %v1122
        %v1335 = vpack.c.b16 %v1127, %v1123
        %v1336 = vpack.c.b16 %v1128, %v1124
        %v1337 = vpack.c.b16 %v1129, %v1125
        %v1338 = vpack.c.b16 %v1134, %v1130
        %v1339 = vpack.c.b16 %v1135, %v1131
        %v1340 = vpack.c.b16 %v1136, %v1132
        %v1341 = vpack.c.b16 %v1137, %v1133
        %v1342 = vpack.c.b16 %v1142, %v1138
        %v1343 = vpack.c.b16 %v1143, %v1139
        %v1344 = vpack.c.b16 %v1144, %v1140
        %v1345 = vpack.c.b16 %v1145, %v1141
        %v1346 = vpack.c.b16 %v1150, %v1146
        %v1347 = vpack.c.b16 %v1151, %v1147
        %v1348 = vpack.c.b16 %v1152, %v1148
        %v1349 = vpack.c.b16 %v1153, %v1149
        %v1350 = vpack.c.b16 %v1158, %v1154
        %v1351 = vpack.c.b16 %v1159, %v1155
        %v1352 = vpack.c.b16 %v1160, %v1156
        %v1353 = vpack.c.b16 %v1161, %v1157
        %v1354 = vpack.c.b16 %v1166, %v1162
        %v1355 = vpack.c.b16 %v1167, %v1163
        %v1356 = vpack.c.b16 %v1168, %v1164
        %v1357 = vpack.c.b16 %v1169, %v1165
        %v1358 = vpack.c.b16 %v1174, %v1170
        %v1359 = vpack.c.b16 %v1175, %v1171
        %v1360 = vpack.c.b16 %v1176, %v1172
        %v1361 = vpack.c.b16 %v1177, %v1173
        %v1362 = vpack.c.b16 %v1182, %v1178
        %v1363 = vpack.c.b16 %v1183, %v1179
        %v1364 = vpack.c.b16 %v1184, %v1180
        %v1365 = vpack.c.b16 %v1185, %v1181
        %v1366 = vpack.c.b16 %v1190, %v1186
        %v1367 = vpack.c.b16 %v1191, %v1187
        %v1368 = vpack.c.b16 %v1192, %v1188
        %v1369 = vpack.c.b16 %v1193, %v1189
        %v1370 = vpack.c.b16 %v1198, %v1194
        %v1371 = vpack.c.b16 %v1199, %v1195
        %v1372 = vpack.c.b16 %v1200, %v1196
        %v1373 = vpack.c.b16 %v1201, %v1197
        %v1374 = vpack.c.b16 %v1206, %v1202
        %v1375 = vpack.c.b16 %v1207, %v1203
        %v1376 = vpack.c.b16 %v1208, %v1204
        %v1377 = vpack.c.b16 %v1209, %v1205
        %v1378 = vpack.c.b16 %v1214, %v1210
        %v1379 = vpack.c.b16 %v1215, %v1211
        %v1380 = vpack.c.b16 %v1216, %v1212
        %v1381 = vpack.c.b16 %v1217, %v1213
        %v1382 = vpack.c.b16 %v1222, %v1218
        %v1383 = vpack.c.b16 %v1223, %v1219
        %v1384 = vpack.c.b16 %v1224, %v1220
        %v1385 = vpack.c.b16 %v1225, %v1221
        %v1386 = vpack.c.b16 %v1230, %v1226
        %v1387 = vpack.c.b16 %v1231, %v1227
        %v1388 = vpack.c.b16 %v1232, %v1228
        %v1389 = vpack.c.b16 %v1233, %v1229
        %v1390 = vpack.c.b16 %v1238, %v1234
        %v1391 = vpack.c.b16 %v1239, %v1235
        %v1392 = vpack.c.b16 %v1240, %v1236
        %v1393 = vpack.c.b16 %v1241, %v1237
        %v1394 = vpack.c.b16 %v1246, %v1242
        %v1395 = vpack.c.b16 %v1247, %v1243
        %v1396 = vpack.c.b16 %v1248, %v1244
        %v1397 = vpack.c.b16 %v1249, %v1245
        %v1398 = vpack.c.b16 %v1254, %v1250
        %v1399 = vpack.c.b16 %v1255, %v1251
        %v1400 = vpack.c.b16 %v1256, %v1252
        %v1401 = vpack.c.b16 %v1257, %v1253
        %v1402 = vpack.c.b16 %v1262, %v1258
        %v1403 = vpack.c.b16 %v1263, %v1259
        %v1404 = vpack.c.b16 %v1264, %v1260
        %v1405 = vpack.c.b16 %v1265, %v1261
        %v1406 = vpack.c.b16 %v1270, %v1266
        %v1407 = vpack.c.b16 %v1271, %v1267
        %v1408 = vpack.c.b16 %v1272, %v1268
        %v1409 = vpack.c.b16 %v1273, %v1269
        %v1410 = vpack.c.b16 %v1278, %v1274
        %v1411 = vpack.c.b16 %v1279, %v1275
        %v1412 = vpack.c.b16 %v1280, %v1276
        %v1413 = vpack.c.b16 %v1281, %v1277
        %v1414 = vpack.c.b16 %v1286, %v1282
        %v1415 = vpack.c.b16 %v1287, %v1283
        %v1416 = vpack.c.b16 %v1288, %v1284
        %v1417 = vpack.c.b16 %v1289, %v1285
        %1546 = vmatpush.bf16.msra.mxu0 %v1318
        %1547 = vmatpush.bf16.msra.mxu0 %v1314
        %1548 = vmatpush.bf16.msra.mxu0 %v1310
        %1549 = vmatpush.bf16.msra.mxu0 %v1306
        %1550 = vmatpush.bf16.msra.mxu0 %v1302
        %1551 = vmatpush.bf16.msra.mxu0 %v1298
        %1552 = vmatpush.bf16.msra.mxu0 %v1294
        %1553 = vmatpush.bf16.msra.mxu0 %v1290
        %1554 = vmatmul.bf16.gmra.mxu0 %v760
        %v1555 = vpop.f32.mrf.mxu0
        %v1556 = vadd.f32 %v898, %v1555
        %v1557 = vpop.f32.mrf.mxu0
        %v1558 = vadd.f32 %v898, %v1557
        %1559 = vmatmul.bf16.gmra.mxu0 %v764
        %v1560 = vpop.f32.mrf.mxu0
        %v1561 = vadd.f32 %v898, %v1560
        %v1562 = vpop.f32.mrf.mxu0
        %v1563 = vadd.f32 %v898, %v1562
        %1564 = vdwg.mxu0
        %1565 = vmatpush.bf16.msra.mxu0 %v1350
        %1566 = vmatpush.bf16.msra.mxu0 %v1346
        %1567 = vmatpush.bf16.msra.mxu0 %v1342
        %1568 = vmatpush.bf16.msra.mxu0 %v1338
        %1569 = vmatpush.bf16.msra.mxu0 %v1334
        %1570 = vmatpush.bf16.msra.mxu0 %v1330
        %1571 = vmatpush.bf16.msra.mxu0 %v1326
        %1572 = vmatpush.bf16.msra.mxu0 %v1322
        %1573 = vmatmul.bf16.gmra.mxu0 %v761
        %v1574 = vpop.f32.mrf.mxu0
        %v1575 = vadd.f32 %v1556, %v1574
        %v1576 = vpop.f32.mrf.mxu0
        %v1577 = vadd.f32 %v1558, %v1576
        %1578 = vmatmul.bf16.gmra.mxu0 %v765
        %v1579 = vpop.f32.mrf.mxu0
        %v1580 = vadd.f32 %v1561, %v1579
        %v1581 = vpop.f32.mrf.mxu0
        %v1582 = vadd.f32 %v1563, %v1581
        %1583 = vdwg.mxu0
        %1584 = vmatpush.bf16.msra.mxu0 %v1382
        %1585 = vmatpush.bf16.msra.mxu0 %v1378
        %1586 = vmatpush.bf16.msra.mxu0 %v1374
        %1587 = vmatpush.bf16.msra.mxu0 %v1370
        %1588 = vmatpush.bf16.msra.mxu0 %v1366
        %1589 = vmatpush.bf16.msra.mxu0 %v1362
        %1590 = vmatpush.bf16.msra.mxu0 %v1358
        %1591 = vmatpush.bf16.msra.mxu0 %v1354
        %1592 = vmatmul.bf16.gmra.mxu0 %v762
        %v1593 = vpop.f32.mrf.mxu0
        %v1594 = vadd.f32 %v1575, %v1593
        %v1595 = vpop.f32.mrf.mxu0
        %v1596 = vadd.f32 %v1577, %v1595
        %1597 = vmatmul.bf16.gmra.mxu0 %v766
        %v1598 = vpop.f32.mrf.mxu0
        %v1599 = vadd.f32 %v1580, %v1598
        %v1600 = vpop.f32.mrf.mxu0
        %v1601 = vadd.f32 %v1582, %v1600
        %1602 = vdwg.mxu0
        %1603 = vmatpush.bf16.msra.mxu0 %v1414
        %1604 = vmatpush.bf16.msra.mxu0 %v1410
        %1605 = vmatpush.bf16.msra.mxu0 %v1406
        %1606 = vmatpush.bf16.msra.mxu0 %v1402
        %1607 = vmatpush.bf16.msra.mxu0 %v1398
        %1608 = vmatpush.bf16.msra.mxu0 %v1394
        %1609 = vmatpush.bf16.msra.mxu0 %v1390
        %1610 = vmatpush.bf16.msra.mxu0 %v1386
        %1611 = vmatmul.bf16.gmra.mxu0 %v763
        %v1612 = vpop.f32.mrf.mxu0
        %v1613 = vadd.f32 %v1594, %v1612
        %v1614 = vpop.f32.mrf.mxu0
        %v1615 = vadd.f32 %v1596, %v1614
        %1616 = vmatmul.bf16.gmra.mxu0 %v767
        %v1617 = vpop.f32.mrf.mxu0
        %v1618 = vadd.f32 %v1599, %v1617
        %v1619 = vpop.f32.mrf.mxu0
        %v1620 = vadd.f32 %v1601, %v1619
        %1621 = vdwg.mxu0
        %1622 = vmatpush.bf16.msra.mxu0 %v1319
        %1623 = vmatpush.bf16.msra.mxu0 %v1315
        %1624 = vmatpush.bf16.msra.mxu0 %v1311
        %1625 = vmatpush.bf16.msra.mxu0 %v1307
        %1626 = vmatpush.bf16.msra.mxu0 %v1303
        %1627 = vmatpush.bf16.msra.mxu0 %v1299
        %1628 = vmatpush.bf16.msra.mxu0 %v1295
        %1629 = vmatpush.bf16.msra.mxu0 %v1291
        %1630 = vmatmul.bf16.gmra.mxu0 %v760
        %v1631 = vpop.f32.mrf.mxu0
        %v1632 = vadd.f32 %v899, %v1631
        %v1633 = vpop.f32.mrf.mxu0
        %v1634 = vadd.f32 %v899, %v1633
        %1635 = vmatmul.bf16.gmra.mxu0 %v764
        %v1636 = vpop.f32.mrf.mxu0
        %v1637 = vadd.f32 %v899, %v1636
        %v1638 = vpop.f32.mrf.mxu0
        %v1639 = vadd.f32 %v899, %v1638
        %1640 = vdwg.mxu0
        %1641 = vmatpush.bf16.msra.mxu0 %v1351
        %1642 = vmatpush.bf16.msra.mxu0 %v1347
        %1643 = vmatpush.bf16.msra.mxu0 %v1343
        %1644 = vmatpush.bf16.msra.mxu0 %v1339
        %1645 = vmatpush.bf16.msra.mxu0 %v1335
        %1646 = vmatpush.bf16.msra.mxu0 %v1331
        %1647 = vmatpush.bf16.msra.mxu0 %v1327
        %1648 = vmatpush.bf16.msra.mxu0 %v1323
        %1649 = vmatmul.bf16.gmra.mxu0 %v761
        %v1650 = vpop.f32.mrf.mxu0
        %v1651 = vadd.f32 %v1632, %v1650
        %v1652 = vpop.f32.mrf.mxu0
        %v1653 = vadd.f32 %v1634, %v1652
        %1654 = vmatmul.bf16.gmra.mxu0 %v765
        %v1655 = vpop.f32.mrf.mxu0
        %v1656 = vadd.f32 %v1637, %v1655
        %v1657 = vpop.f32.mrf.mxu0
        %v1658 = vadd.f32 %v1639, %v1657
        %1659 = vdwg.mxu0
        %1660 = vmatpush.bf16.msra.mxu0 %v1383
        %1661 = vmatpush.bf16.msra.mxu0 %v1379
        %1662 = vmatpush.bf16.msra.mxu0 %v1375
        %1663 = vmatpush.bf16.msra.mxu0 %v1371
        %1664 = vmatpush.bf16.msra.mxu0 %v1367
        %1665 = vmatpush.bf16.msra.mxu0 %v1363
        %1666 = vmatpush.bf16.msra.mxu0 %v1359
        %1667 = vmatpush.bf16.msra.mxu0 %v1355
        %1668 = vmatmul.bf16.gmra.mxu0 %v762
        %v1669 = vpop.f32.mrf.mxu0
        %v1670 = vadd.f32 %v1651, %v1669
        %v1671 = vpop.f32.mrf.mxu0
        %v1672 = vadd.f32 %v1653, %v1671
        %1673 = vmatmul.bf16.gmra.mxu0 %v766
        %v1674 = vpop.f32.mrf.mxu0
        %v1675 = vadd.f32 %v1656, %v1674
        %v1676 = vpop.f32.mrf.mxu0
        %v1677 = vadd.f32 %v1658, %v1676
        %1678 = vdwg.mxu0
        %1679 = vmatpush.bf16.msra.mxu0 %v1415
        %1680 = vmatpush.bf16.msra.mxu0 %v1411
        %1681 = vmatpush.bf16.msra.mxu0 %v1407
        %1682 = vmatpush.bf16.msra.mxu0 %v1403
        %1683 = vmatpush.bf16.msra.mxu0 %v1399
        %1684 = vmatpush.bf16.msra.mxu0 %v1395
        %1685 = vmatpush.bf16.msra.mxu0 %v1391
        %1686 = vmatpush.bf16.msra.mxu0 %v1387
        %1687 = vmatmul.bf16.gmra.mxu0 %v763
        %v1688 = vpop.f32.mrf.mxu0
        %v1689 = vadd.f32 %v1670, %v1688
        %v1690 = vpop.f32.mrf.mxu0
        %v1691 = vadd.f32 %v1672, %v1690
        %1692 = vmatmul.bf16.gmra.mxu0 %v767
        %v1693 = vpop.f32.mrf.mxu0
        %v1694 = vadd.f32 %v1675, %v1693
        %v1695 = vpop.f32.mrf.mxu0
        %v1696 = vadd.f32 %v1677, %v1695
        %1697 = vdwg.mxu0
        %1698 = vmatpush.bf16.msra.mxu0 %v1320
        %1699 = vmatpush.bf16.msra.mxu0 %v1316
        %1700 = vmatpush.bf16.msra.mxu0 %v1312
        %1701 = vmatpush.bf16.msra.mxu0 %v1308
        %1702 = vmatpush.bf16.msra.mxu0 %v1304
        %1703 = vmatpush.bf16.msra.mxu0 %v1300
        %1704 = vmatpush.bf16.msra.mxu0 %v1296
        %1705 = vmatpush.bf16.msra.mxu0 %v1292
        %1706 = vmatmul.bf16.gmra.mxu0 %v760
        %v1707 = vpop.f32.mrf.mxu0
        %v1708 = vadd.f32 %v900, %v1707
        %v1709 = vpop.f32.mrf.mxu0
        %v1710 = vadd.f32 %v900, %v1709
        %1711 = vmatmul.bf16.gmra.mxu0 %v764
        %v1712 = vpop.f32.mrf.mxu0
        %v1713 = vadd.f32 %v900, %v1712
        %v1714 = vpop.f32.mrf.mxu0
        %v1715 = vadd.f32 %v900, %v1714
        %1716 = vdwg.mxu0
        %1717 = vmatpush.bf16.msra.mxu0 %v1352
        %1718 = vmatpush.bf16.msra.mxu0 %v1348
        %1719 = vmatpush.bf16.msra.mxu0 %v1344
        %1720 = vmatpush.bf16.msra.mxu0 %v1340
        %1721 = vmatpush.bf16.msra.mxu0 %v1336
        %1722 = vmatpush.bf16.msra.mxu0 %v1332
        %1723 = vmatpush.bf16.msra.mxu0 %v1328
        %1724 = vmatpush.bf16.msra.mxu0 %v1324
        %1725 = vmatmul.bf16.gmra.mxu0 %v761
        %v1726 = vpop.f32.mrf.mxu0
        %v1727 = vadd.f32 %v1708, %v1726
        %v1728 = vpop.f32.mrf.mxu0
        %v1729 = vadd.f32 %v1710, %v1728
        %1730 = vmatmul.bf16.gmra.mxu0 %v765
        %v1731 = vpop.f32.mrf.mxu0
        %v1732 = vadd.f32 %v1713, %v1731
        %v1733 = vpop.f32.mrf.mxu0
        %v1734 = vadd.f32 %v1715, %v1733
        %1735 = vdwg.mxu0
        %1736 = vmatpush.bf16.msra.mxu0 %v1384
        %1737 = vmatpush.bf16.msra.mxu0 %v1380
        %1738 = vmatpush.bf16.msra.mxu0 %v1376
        %1739 = vmatpush.bf16.msra.mxu0 %v1372
        %1740 = vmatpush.bf16.msra.mxu0 %v1368
        %1741 = vmatpush.bf16.msra.mxu0 %v1364
        %1742 = vmatpush.bf16.msra.mxu0 %v1360
        %1743 = vmatpush.bf16.msra.mxu0 %v1356
        %1744 = vmatmul.bf16.gmra.mxu0 %v762
        %v1745 = vpop.f32.mrf.mxu0
        %v1746 = vadd.f32 %v1727, %v1745
        %v1747 = vpop.f32.mrf.mxu0
        %v1748 = vadd.f32 %v1729, %v1747
        %1749 = vmatmul.bf16.gmra.mxu0 %v766
        %v1750 = vpop.f32.mrf.mxu0
        %v1751 = vadd.f32 %v1732, %v1750
        %v1752 = vpop.f32.mrf.mxu0
        %v1753 = vadd.f32 %v1734, %v1752
        %1754 = vdwg.mxu0
        %1755 = vmatpush.bf16.msra.mxu0 %v1416
        %1756 = vmatpush.bf16.msra.mxu0 %v1412
        %1757 = vmatpush.bf16.msra.mxu0 %v1408
        %1758 = vmatpush.bf16.msra.mxu0 %v1404
        %1759 = vmatpush.bf16.msra.mxu0 %v1400
        %1760 = vmatpush.bf16.msra.mxu0 %v1396
        %1761 = vmatpush.bf16.msra.mxu0 %v1392
        %1762 = vmatpush.bf16.msra.mxu0 %v1388
        %1763 = vmatmul.bf16.gmra.mxu0 %v763
        %v1764 = vpop.f32.mrf.mxu0
        %v1765 = vadd.f32 %v1746, %v1764
        %v1766 = vpop.f32.mrf.mxu0
        %v1767 = vadd.f32 %v1748, %v1766
        %1768 = vmatmul.bf16.gmra.mxu0 %v767
        %v1769 = vpop.f32.mrf.mxu0
        %v1770 = vadd.f32 %v1751, %v1769
        %v1771 = vpop.f32.mrf.mxu0
        %v1772 = vadd.f32 %v1753, %v1771
        %1773 = vdwg.mxu0
        %1774 = vmatpush.bf16.msra.mxu0 %v1321
        %1775 = vmatpush.bf16.msra.mxu0 %v1317
        %1776 = vmatpush.bf16.msra.mxu0 %v1313
        %1777 = vmatpush.bf16.msra.mxu0 %v1309
        %1778 = vmatpush.bf16.msra.mxu0 %v1305
        %1779 = vmatpush.bf16.msra.mxu0 %v1301
        %1780 = vmatpush.bf16.msra.mxu0 %v1297
        %1781 = vmatpush.bf16.msra.mxu0 %v1293
        %1782 = vmatmul.bf16.gmra.mxu0 %v760
        %v1783 = vpop.f32.mrf.mxu0
        %v1784 = vadd.f32 %v901, %v1783
        %v1785 = vpop.f32.mrf.mxu0
        %v1786 = vadd.f32 %v901, %v1785
        %1787 = vmatmul.bf16.gmra.mxu0 %v764
        %v1788 = vpop.f32.mrf.mxu0
        %v1789 = vadd.f32 %v901, %v1788
        %v1790 = vpop.f32.mrf.mxu0
        %v1791 = vadd.f32 %v901, %v1790
        %1792 = vdwg.mxu0
        %1793 = vmatpush.bf16.msra.mxu0 %v1353
        %1794 = vmatpush.bf16.msra.mxu0 %v1349
        %1795 = vmatpush.bf16.msra.mxu0 %v1345
        %1796 = vmatpush.bf16.msra.mxu0 %v1341
        %1797 = vmatpush.bf16.msra.mxu0 %v1337
        %1798 = vmatpush.bf16.msra.mxu0 %v1333
        %1799 = vmatpush.bf16.msra.mxu0 %v1329
        %1800 = vmatpush.bf16.msra.mxu0 %v1325
        %1801 = vmatmul.bf16.gmra.mxu0 %v761
        %v1802 = vpop.f32.mrf.mxu0
        %v1803 = vadd.f32 %v1784, %v1802
        %v1804 = vpop.f32.mrf.mxu0
        %v1805 = vadd.f32 %v1786, %v1804
        %1806 = vmatmul.bf16.gmra.mxu0 %v765
        %v1807 = vpop.f32.mrf.mxu0
        %v1808 = vadd.f32 %v1789, %v1807
        %v1809 = vpop.f32.mrf.mxu0
        %v1810 = vadd.f32 %v1791, %v1809
        %1811 = vdwg.mxu0
        %1812 = vmatpush.bf16.msra.mxu0 %v1385
        %1813 = vmatpush.bf16.msra.mxu0 %v1381
        %1814 = vmatpush.bf16.msra.mxu0 %v1377
        %1815 = vmatpush.bf16.msra.mxu0 %v1373
        %1816 = vmatpush.bf16.msra.mxu0 %v1369
        %1817 = vmatpush.bf16.msra.mxu0 %v1365
        %1818 = vmatpush.bf16.msra.mxu0 %v1361
        %1819 = vmatpush.bf16.msra.mxu0 %v1357
        %1820 = vmatmul.bf16.gmra.mxu0 %v762
        %v1821 = vpop.f32.mrf.mxu0
        %v1822 = vadd.f32 %v1803, %v1821
        %v1823 = vpop.f32.mrf.mxu0
        %v1824 = vadd.f32 %v1805, %v1823
        %1825 = vmatmul.bf16.gmra.mxu0 %v766
        %v1826 = vpop.f32.mrf.mxu0
        %v1827 = vadd.f32 %v1808, %v1826
        %v1828 = vpop.f32.mrf.mxu0
        %v1829 = vadd.f32 %v1810, %v1828
        %1830 = vdwg.mxu0
        %1831 = vmatpush.bf16.msra.mxu0 %v1417
        %1832 = vmatpush.bf16.msra.mxu0 %v1413
        %1833 = vmatpush.bf16.msra.mxu0 %v1409
        %1834 = vmatpush.bf16.msra.mxu0 %v1405
        %1835 = vmatpush.bf16.msra.mxu0 %v1401
        %1836 = vmatpush.bf16.msra.mxu0 %v1397
        %1837 = vmatpush.bf16.msra.mxu0 %v1393
        %1838 = vmatpush.bf16.msra.mxu0 %v1389
        %1839 = vmatmul.bf16.gmra.mxu0 %v763
        %v1840 = vpop.f32.mrf.mxu0
        %v1841 = vadd.f32 %v1822, %v1840
        %v1842 = vpop.f32.mrf.mxu0
        %v1843 = vadd.f32 %v1824, %v1842
        %1844 = vmatmul.bf16.gmra.mxu0 %v767
        %v1845 = vpop.f32.mrf.mxu0
        %v1846 = vadd.f32 %v1827, %v1845
        %v1847 = vpop.f32.mrf.mxu0
        %v1848 = vadd.f32 %v1829, %v1847
        %1849 = vdwg.mxu0
        %v1850 = vmax.f32 %v1613, 0.0
        %v1851 = vmax.f32 %v1689, 0.0
        %v1852 = vmax.f32 %v1765, 0.0
        %v1853 = vmax.f32 %v1841, 0.0
        %v1854 = vmax.f32 %v1615, 0.0
        %v1855 = vmax.f32 %v1691, 0.0
        %v1856 = vmax.f32 %v1767, 0.0
        %v1857 = vmax.f32 %v1843, 0.0
        %v1858 = vmax.f32 %v1618, 0.0
        %v1859 = vmax.f32 %v1694, 0.0
        %v1860 = vmax.f32 %v1770, 0.0
        %v1861 = vmax.f32 %v1846, 0.0
        %v1862 = vmax.f32 %v1620, 0.0
        %v1863 = vmax.f32 %v1696, 0.0
        %v1864 = vmax.f32 %v1772, 0.0
        %v1865 = vmax.f32 %v1848, 0.0
        %v1866 = vpack.c.bf16 %v1854, %v1850
        %v1867 = vpack.c.bf16 %v1855, %v1851
        %v1868 = vpack.c.bf16 %v1856, %v1852
        %v1869 = vpack.c.bf16 %v1857, %v1853
        %v1870 = vpack.c.bf16 %v1862, %v1858
        %v1871 = vpack.c.bf16 %v1863, %v1859
        %v1872 = vpack.c.bf16 %v1864, %v1860
        %v1873 = vpack.c.bf16 %v1865, %v1861
        %v1874 = vld [vmem:[#allocation11] sm:$0xff]
        %v1875 = vld [vmem:[#allocation11 + $0x8] sm:$0xff]
        %v1876 = vld [vmem:[#allocation11 + $0x10] sm:$0xff]
        %v1877 = vld [vmem:[#allocation11 + $0x18] sm:$0xff]
        %v1878 = vld [vmem:[#allocation11 + $0x20] sm:$0xff]
        %v1879 = vld [vmem:[#allocation11 + $0x28] sm:$0xff]
        %v1880 = vld [vmem:[#allocation11 + $0x30] sm:$0xff]
        %v1881 = vld [vmem:[#allocation11 + $0x38] sm:$0xff]
        %v1882 = vld [vmem:[#allocation11 + $0x40] sm:$0xff]
        %v1883 = vld [vmem:[#allocation11 + $0x48] sm:$0xff]
        %v1884 = vld [vmem:[#allocation11 + $0x50] sm:$0xff]
        %v1885 = vld [vmem:[#allocation11 + $0x58] sm:$0xff]
        %v1886 = vld [vmem:[#allocation11 + $0x60] sm:$0xff]
        %v1887 = vld [vmem:[#allocation11 + $0x68] sm:$0xff]
        %v1888 = vld [vmem:[#allocation11 + $0x70] sm:$0xff]
        %v1889 = vld [vmem:[#allocation11 + $0x78] sm:$0xff]
        %v1890 = vld [vmem:[#allocation11 + $0x80] sm:$0xff]
        %v1891 = vld [vmem:[#allocation11 + $0x88] sm:$0xff]
        %v1892 = vld [vmem:[#allocation11 + $0x90] sm:$0xff]
        %v1893 = vld [vmem:[#allocation11 + $0x98] sm:$0xff]
        %v1894 = vld [vmem:[#allocation11 + $0xa0] sm:$0xff]
        %v1895 = vld [vmem:[#allocation11 + $0xa8] sm:$0xff]
        %v1896 = vld [vmem:[#allocation11 + $0xb0] sm:$0xff]
        %v1897 = vld [vmem:[#allocation11 + $0xb8] sm:$0xff]
        %v1898 = vld [vmem:[#allocation11 + $0xc0] sm:$0xff]
        %v1899 = vld [vmem:[#allocation11 + $0xc8] sm:$0xff]
        %v1900 = vld [vmem:[#allocation11 + $0xd0] sm:$0xff]
        %v1901 = vld [vmem:[#allocation11 + $0xd8] sm:$0xff]
        %v1902 = vld [vmem:[#allocation11 + $0xe0] sm:$0xff]
        %v1903 = vld [vmem:[#allocation11 + $0xe8] sm:$0xff]
        %v1904 = vld [vmem:[#allocation11 + $0xf0] sm:$0xff]
        %v1905 = vld [vmem:[#allocation11 + $0xf8] sm:$0xff]
        %v1906 = vld [vmem:[#allocation11 + $0x100] sm:$0xff]
        %v1907 = vld [vmem:[#allocation11 + $0x108] sm:$0xff]
        %v1908 = vld [vmem:[#allocation11 + $0x110] sm:$0xff]
        %v1909 = vld [vmem:[#allocation11 + $0x118] sm:$0xff]
        %v1910 = vld [vmem:[#allocation11 + $0x120] sm:$0xff]
        %v1911 = vld [vmem:[#allocation11 + $0x128] sm:$0xff]
        %v1912 = vld [vmem:[#allocation11 + $0x130] sm:$0xff]
        %v1913 = vld [vmem:[#allocation11 + $0x138] sm:$0xff]
        %v1914 = vld [vmem:[#allocation11 + $0x140] sm:$0xff]
        %v1915 = vld [vmem:[#allocation11 + $0x148] sm:$0xff]
        %v1916 = vld [vmem:[#allocation11 + $0x150] sm:$0xff]
        %v1917 = vld [vmem:[#allocation11 + $0x158] sm:$0xff]
        %v1918 = vld [vmem:[#allocation11 + $0x160] sm:$0xff]
        %v1919 = vld [vmem:[#allocation11 + $0x168] sm:$0xff]
        %v1920 = vld [vmem:[#allocation11 + $0x170] sm:$0xff]
        %v1921 = vld [vmem:[#allocation11 + $0x178] sm:$0xff]
        %v1922 = vld [vmem:[#allocation11 + $0x180] sm:$0xff]
        %v1923 = vld [vmem:[#allocation11 + $0x188] sm:$0xff]
        %v1924 = vld [vmem:[#allocation11 + $0x190] sm:$0xff]
        %v1925 = vld [vmem:[#allocation11 + $0x198] sm:$0xff]
        %v1926 = vld [vmem:[#allocation11 + $0x1a0] sm:$0xff]
        %v1927 = vld [vmem:[#allocation11 + $0x1a8] sm:$0xff]
        %v1928 = vld [vmem:[#allocation11 + $0x1b0] sm:$0xff]
        %v1929 = vld [vmem:[#allocation11 + $0x1b8] sm:$0xff]
        %v1930 = vld [vmem:[#allocation11 + $0x1c0] sm:$0xff]
        %v1931 = vld [vmem:[#allocation11 + $0x1c8] sm:$0xff]
        %v1932 = vld [vmem:[#allocation11 + $0x1d0] sm:$0xff]
        %v1933 = vld [vmem:[#allocation11 + $0x1d8] sm:$0xff]
        %v1934 = vld [vmem:[#allocation11 + $0x1e0] sm:$0xff]
        %v1935 = vld [vmem:[#allocation11 + $0x1e8] sm:$0xff]
        %v1936 = vld [vmem:[#allocation11 + $0x1f0] sm:$0xff]
        %v1937 = vld [vmem:[#allocation11 + $0x1f8] sm:$0xff]
        %v1938 = vld [vmem:[#allocation11 + $0x200] sm:$0xff]
        %v1939 = vld [vmem:[#allocation11 + $0x208] sm:$0xff]
        %v1940 = vld [vmem:[#allocation11 + $0x210] sm:$0xff]
        %v1941 = vld [vmem:[#allocation11 + $0x218] sm:$0xff]
        %v1942 = vld [vmem:[#allocation11 + $0x220] sm:$0xff]
        %v1943 = vld [vmem:[#allocation11 + $0x228] sm:$0xff]
        %v1944 = vld [vmem:[#allocation11 + $0x230] sm:$0xff]
        %v1945 = vld [vmem:[#allocation11 + $0x238] sm:$0xff]
        %v1946 = vld [vmem:[#allocation11 + $0x240] sm:$0xff]
        %v1947 = vld [vmem:[#allocation11 + $0x248] sm:$0xff]
        %v1948 = vld [vmem:[#allocation11 + $0x250] sm:$0xff]
        %v1949 = vld [vmem:[#allocation11 + $0x258] sm:$0xff]
        %v1950 = vld [vmem:[#allocation11 + $0x260] sm:$0xff]
        %v1951 = vld [vmem:[#allocation11 + $0x268] sm:$0xff]
        %v1952 = vld [vmem:[#allocation11 + $0x270] sm:$0xff]
        %v1953 = vld [vmem:[#allocation11 + $0x278] sm:$0xff]
        %v1954 = vld [vmem:[#allocation11 + $0x280] sm:$0xff]
        %v1955 = vld [vmem:[#allocation11 + $0x288] sm:$0xff]
        %v1956 = vld [vmem:[#allocation11 + $0x290] sm:$0xff]
        %v1957 = vld [vmem:[#allocation11 + $0x298] sm:$0xff]
        %v1958 = vld [vmem:[#allocation11 + $0x2a0] sm:$0xff]
        %v1959 = vld [vmem:[#allocation11 + $0x2a8] sm:$0xff]
        %v1960 = vld [vmem:[#allocation11 + $0x2b0] sm:$0xff]
        %v1961 = vld [vmem:[#allocation11 + $0x2b8] sm:$0xff]
        %v1962 = vld [vmem:[#allocation11 + $0x2c0] sm:$0xff]
        %v1963 = vld [vmem:[#allocation11 + $0x2c8] sm:$0xff]
        %v1964 = vld [vmem:[#allocation11 + $0x2d0] sm:$0xff]
        %v1965 = vld [vmem:[#allocation11 + $0x2d8] sm:$0xff]
        %v1966 = vld [vmem:[#allocation11 + $0x2e0] sm:$0xff]
        %v1967 = vld [vmem:[#allocation11 + $0x2e8] sm:$0xff]
        %v1968 = vld [vmem:[#allocation11 + $0x2f0] sm:$0xff]
        %v1969 = vld [vmem:[#allocation11 + $0x2f8] sm:$0xff]
        %v1970 = vld [vmem:[#allocation11 + $0x300] sm:$0xff]
        %v1971 = vld [vmem:[#allocation11 + $0x308] sm:$0xff]
        %v1972 = vld [vmem:[#allocation11 + $0x310] sm:$0xff]
        %v1973 = vld [vmem:[#allocation11 + $0x318] sm:$0xff]
        %v1974 = vld [vmem:[#allocation11 + $0x320] sm:$0xff]
        %v1975 = vld [vmem:[#allocation11 + $0x328] sm:$0xff]
        %v1976 = vld [vmem:[#allocation11 + $0x330] sm:$0xff]
        %v1977 = vld [vmem:[#allocation11 + $0x338] sm:$0xff]
        %v1978 = vld [vmem:[#allocation11 + $0x340] sm:$0xff]
        %v1979 = vld [vmem:[#allocation11 + $0x348] sm:$0xff]
        %v1980 = vld [vmem:[#allocation11 + $0x350] sm:$0xff]
        %v1981 = vld [vmem:[#allocation11 + $0x358] sm:$0xff]
        %v1982 = vld [vmem:[#allocation11 + $0x360] sm:$0xff]
        %v1983 = vld [vmem:[#allocation11 + $0x368] sm:$0xff]
        %v1984 = vld [vmem:[#allocation11 + $0x370] sm:$0xff]
        %v1985 = vld [vmem:[#allocation11 + $0x378] sm:$0xff]
        %v1986 = vld [vmem:[#allocation11 + $0x380] sm:$0xff]
        %v1987 = vld [vmem:[#allocation11 + $0x388] sm:$0xff]
        %v1988 = vld [vmem:[#allocation11 + $0x390] sm:$0xff]
        %v1989 = vld [vmem:[#allocation11 + $0x398] sm:$0xff]
        %v1990 = vld [vmem:[#allocation11 + $0x3a0] sm:$0xff]
        %v1991 = vld [vmem:[#allocation11 + $0x3a8] sm:$0xff]
        %v1992 = vld [vmem:[#allocation11 + $0x3b0] sm:$0xff]
        %v1993 = vld [vmem:[#allocation11 + $0x3b8] sm:$0xff]
        %v1994 = vld [vmem:[#allocation11 + $0x3c0] sm:$0xff]
        %v1995 = vld [vmem:[#allocation11 + $0x3c8] sm:$0xff]
        %v1996 = vld [vmem:[#allocation11 + $0x3d0] sm:$0xff]
        %v1997 = vld [vmem:[#allocation11 + $0x3d8] sm:$0xff]
        %v1998 = vld [vmem:[#allocation11 + $0x3e0] sm:$0xff]
        %v1999 = vld [vmem:[#allocation11 + $0x3e8] sm:$0xff]
        %v2000 = vld [vmem:[#allocation11 + $0x3f0] sm:$0xff]
        %v2001 = vld [vmem:[#allocation11 + $0x3f8] sm:$0xff]
        %v2002 = vld [vmem:[%s6] sm:$0xf]
        %v2004 = vperm.slane %v2002, 0
        %v2005 = vperm.slane %v2002, 1
        %v2006 = vperm.slane %v2002, 2
        %v2007 = vperm.slane %v2002, 3
        %v2140 = vunpack.c.l.b16 %v1874
        %v2141 = vunpack.c.h.b16 %v1874
        %v2142 = vunpack.c.l.b16 %v1875
        %v2143 = vunpack.c.h.b16 %v1875
        %v2144 = vunpack.c.l.b16 %v1876
        %v2145 = vunpack.c.h.b16 %v1876
        %v2146 = vunpack.c.l.b16 %v1877
        %v2147 = vunpack.c.h.b16 %v1877
        %v2148 = vunpack.c.l.b16 %v1878
        %v2149 = vunpack.c.h.b16 %v1878
        %v2150 = vunpack.c.l.b16 %v1879
        %v2151 = vunpack.c.h.b16 %v1879
        %v2152 = vunpack.c.l.b16 %v1880
        %v2153 = vunpack.c.h.b16 %v1880
        %v2154 = vunpack.c.l.b16 %v1881
        %v2155 = vunpack.c.h.b16 %v1881
        %v2156 = vunpack.c.l.b16 %v1882
        %v2157 = vunpack.c.h.b16 %v1882
        %v2158 = vunpack.c.l.b16 %v1883
        %v2159 = vunpack.c.h.b16 %v1883
        %v2160 = vunpack.c.l.b16 %v1884
        %v2161 = vunpack.c.h.b16 %v1884
        %v2162 = vunpack.c.l.b16 %v1885
        %v2163 = vunpack.c.h.b16 %v1885
        %v2164 = vunpack.c.l.b16 %v1886
        %v2165 = vunpack.c.h.b16 %v1886
        %v2166 = vunpack.c.l.b16 %v1887
        %v2167 = vunpack.c.h.b16 %v1887
        %v2168 = vunpack.c.l.b16 %v1888
        %v2169 = vunpack.c.h.b16 %v1888
        %v2170 = vunpack.c.l.b16 %v1889
        %v2171 = vunpack.c.h.b16 %v1889
        %v2172 = vunpack.c.l.b16 %v1890
        %v2173 = vunpack.c.h.b16 %v1890
        %v2174 = vunpack.c.l.b16 %v1891
        %v2175 = vunpack.c.h.b16 %v1891
        %v2176 = vunpack.c.l.b16 %v1892
        %v2177 = vunpack.c.h.b16 %v1892
        %v2178 = vunpack.c.l.b16 %v1893
        %v2179 = vunpack.c.h.b16 %v1893
        %v2180 = vunpack.c.l.b16 %v1894
        %v2181 = vunpack.c.h.b16 %v1894
        %v2182 = vunpack.c.l.b16 %v1895
        %v2183 = vunpack.c.h.b16 %v1895
        %v2184 = vunpack.c.l.b16 %v1896
        %v2185 = vunpack.c.h.b16 %v1896
        %v2186 = vunpack.c.l.b16 %v1897
        %v2187 = vunpack.c.h.b16 %v1897
        %v2188 = vunpack.c.l.b16 %v1898
        %v2189 = vunpack.c.h.b16 %v1898
        %v2190 = vunpack.c.l.b16 %v1899
        %v2191 = vunpack.c.h.b16 %v1899
        %v2192 = vunpack.c.l.b16 %v1900
        %v2193 = vunpack.c.h.b16 %v1900
        %v2194 = vunpack.c.l.b16 %v1901
        %v2195 = vunpack.c.h.b16 %v1901
        %v2196 = vunpack.c.l.b16 %v1902
        %v2197 = vunpack.c.h.b16 %v1902
        %v2198 = vunpack.c.l.b16 %v1903
        %v2199 = vunpack.c.h.b16 %v1903
        %v2200 = vunpack.c.l.b16 %v1904
        %v2201 = vunpack.c.h.b16 %v1904
        %v2202 = vunpack.c.l.b16 %v1905
        %v2203 = vunpack.c.h.b16 %v1905
        %v2204 = vunpack.c.l.b16 %v1906
        %v2205 = vunpack.c.h.b16 %v1906
        %v2206 = vunpack.c.l.b16 %v1907
        %v2207 = vunpack.c.h.b16 %v1907
        %v2208 = vunpack.c.l.b16 %v1908
        %v2209 = vunpack.c.h.b16 %v1908
        %v2210 = vunpack.c.l.b16 %v1909
        %v2211 = vunpack.c.h.b16 %v1909
        %v2212 = vunpack.c.l.b16 %v1910
        %v2213 = vunpack.c.h.b16 %v1910
        %v2214 = vunpack.c.l.b16 %v1911
        %v2215 = vunpack.c.h.b16 %v1911
        %v2216 = vunpack.c.l.b16 %v1912
        %v2217 = vunpack.c.h.b16 %v1912
        %v2218 = vunpack.c.l.b16 %v1913
        %v2219 = vunpack.c.h.b16 %v1913
        %v2220 = vunpack.c.l.b16 %v1914
        %v2221 = vunpack.c.h.b16 %v1914
        %v2222 = vunpack.c.l.b16 %v1915
        %v2223 = vunpack.c.h.b16 %v1915
        %v2224 = vunpack.c.l.b16 %v1916
        %v2225 = vunpack.c.h.b16 %v1916
        %v2226 = vunpack.c.l.b16 %v1917
        %v2227 = vunpack.c.h.b16 %v1917
        %v2228 = vunpack.c.l.b16 %v1918
        %v2229 = vunpack.c.h.b16 %v1918
        %v2230 = vunpack.c.l.b16 %v1919
        %v2231 = vunpack.c.h.b16 %v1919
        %v2232 = vunpack.c.l.b16 %v1920
        %v2233 = vunpack.c.h.b16 %v1920
        %v2234 = vunpack.c.l.b16 %v1921
        %v2235 = vunpack.c.h.b16 %v1921
        %v2236 = vunpack.c.l.b16 %v1922
        %v2237 = vunpack.c.h.b16 %v1922
        %v2238 = vunpack.c.l.b16 %v1923
        %v2239 = vunpack.c.h.b16 %v1923
        %v2240 = vunpack.c.l.b16 %v1924
        %v2241 = vunpack.c.h.b16 %v1924
        %v2242 = vunpack.c.l.b16 %v1925
        %v2243 = vunpack.c.h.b16 %v1925
        %v2244 = vunpack.c.l.b16 %v1926
        %v2245 = vunpack.c.h.b16 %v1926
        %v2246 = vunpack.c.l.b16 %v1927
        %v2247 = vunpack.c.h.b16 %v1927
        %v2248 = vunpack.c.l.b16 %v1928
        %v2249 = vunpack.c.h.b16 %v1928
        %v2250 = vunpack.c.l.b16 %v1929
        %v2251 = vunpack.c.h.b16 %v1929
        %v2252 = vunpack.c.l.b16 %v1930
        %v2253 = vunpack.c.h.b16 %v1930
        %v2254 = vunpack.c.l.b16 %v1931
        %v2255 = vunpack.c.h.b16 %v1931
        %v2256 = vunpack.c.l.b16 %v1932
        %v2257 = vunpack.c.h.b16 %v1932
        %v2258 = vunpack.c.l.b16 %v1933
        %v2259 = vunpack.c.h.b16 %v1933
        %v2260 = vunpack.c.l.b16 %v1934
        %v2261 = vunpack.c.h.b16 %v1934
        %v2262 = vunpack.c.l.b16 %v1935
        %v2263 = vunpack.c.h.b16 %v1935
        %v2264 = vunpack.c.l.b16 %v1936
        %v2265 = vunpack.c.h.b16 %v1936
        %v2266 = vunpack.c.l.b16 %v1937
        %v2267 = vunpack.c.h.b16 %v1937
        %v2268 = vunpack.c.l.b16 %v1938
        %v2269 = vunpack.c.h.b16 %v1938
        %v2270 = vunpack.c.l.b16 %v1939
        %v2271 = vunpack.c.h.b16 %v1939
        %v2272 = vunpack.c.l.b16 %v1940
        %v2273 = vunpack.c.h.b16 %v1940
        %v2274 = vunpack.c.l.b16 %v1941
        %v2275 = vunpack.c.h.b16 %v1941
        %v2276 = vunpack.c.l.b16 %v1942
        %v2277 = vunpack.c.h.b16 %v1942
        %v2278 = vunpack.c.l.b16 %v1943
        %v2279 = vunpack.c.h.b16 %v1943
        %v2280 = vunpack.c.l.b16 %v1944
        %v2281 = vunpack.c.h.b16 %v1944
        %v2282 = vunpack.c.l.b16 %v1945
        %v2283 = vunpack.c.h.b16 %v1945
        %v2284 = vunpack.c.l.b16 %v1946
        %v2285 = vunpack.c.h.b16 %v1946
        %v2286 = vunpack.c.l.b16 %v1947
        %v2287 = vunpack.c.h.b16 %v1947
        %v2288 = vunpack.c.l.b16 %v1948
        %v2289 = vunpack.c.h.b16 %v1948
        %v2290 = vunpack.c.l.b16 %v1949
        %v2291 = vunpack.c.h.b16 %v1949
        %v2292 = vunpack.c.l.b16 %v1950
        %v2293 = vunpack.c.h.b16 %v1950
        %v2294 = vunpack.c.l.b16 %v1951
        %v2295 = vunpack.c.h.b16 %v1951
        %v2296 = vunpack.c.l.b16 %v1952
        %v2297 = vunpack.c.h.b16 %v1952
        %v2298 = vunpack.c.l.b16 %v1953
        %v2299 = vunpack.c.h.b16 %v1953
        %v2300 = vunpack.c.l.b16 %v1954
        %v2301 = vunpack.c.h.b16 %v1954
        %v2302 = vunpack.c.l.b16 %v1955
        %v2303 = vunpack.c.h.b16 %v1955
        %v2304 = vunpack.c.l.b16 %v1956
        %v2305 = vunpack.c.h.b16 %v1956
        %v2306 = vunpack.c.l.b16 %v1957
        %v2307 = vunpack.c.h.b16 %v1957
        %v2308 = vunpack.c.l.b16 %v1958
        %v2309 = vunpack.c.h.b16 %v1958
        %v2310 = vunpack.c.l.b16 %v1959
        %v2311 = vunpack.c.h.b16 %v1959
        %v2312 = vunpack.c.l.b16 %v1960
        %v2313 = vunpack.c.h.b16 %v1960
        %v2314 = vunpack.c.l.b16 %v1961
        %v2315 = vunpack.c.h.b16 %v1961
        %v2316 = vunpack.c.l.b16 %v1962
        %v2317 = vunpack.c.h.b16 %v1962
        %v2318 = vunpack.c.l.b16 %v1963
        %v2319 = vunpack.c.h.b16 %v1963
        %v2320 = vunpack.c.l.b16 %v1964
        %v2321 = vunpack.c.h.b16 %v1964
        %v2322 = vunpack.c.l.b16 %v1965
        %v2323 = vunpack.c.h.b16 %v1965
        %v2324 = vunpack.c.l.b16 %v1966
        %v2325 = vunpack.c.h.b16 %v1966
        %v2326 = vunpack.c.l.b16 %v1967
        %v2327 = vunpack.c.h.b16 %v1967
        %v2328 = vunpack.c.l.b16 %v1968
        %v2329 = vunpack.c.h.b16 %v1968
        %v2330 = vunpack.c.l.b16 %v1969
        %v2331 = vunpack.c.h.b16 %v1969
        %v2332 = vunpack.c.l.b16 %v1970
        %v2333 = vunpack.c.h.b16 %v1970
        %v2334 = vunpack.c.l.b16 %v1971
        %v2335 = vunpack.c.h.b16 %v1971
        %v2336 = vunpack.c.l.b16 %v1972
        %v2337 = vunpack.c.h.b16 %v1972
        %v2338 = vunpack.c.l.b16 %v1973
        %v2339 = vunpack.c.h.b16 %v1973
        %v2340 = vunpack.c.l.b16 %v1974
        %v2341 = vunpack.c.h.b16 %v1974
        %v2342 = vunpack.c.l.b16 %v1975
        %v2343 = vunpack.c.h.b16 %v1975
        %v2344 = vunpack.c.l.b16 %v1976
        %v2345 = vunpack.c.h.b16 %v1976
        %v2346 = vunpack.c.l.b16 %v1977
        %v2347 = vunpack.c.h.b16 %v1977
        %v2348 = vunpack.c.l.b16 %v1978
        %v2349 = vunpack.c.h.b16 %v1978
        %v2350 = vunpack.c.l.b16 %v1979
        %v2351 = vunpack.c.h.b16 %v1979
        %v2352 = vunpack.c.l.b16 %v1980
        %v2353 = vunpack.c.h.b16 %v1980
        %v2354 = vunpack.c.l.b16 %v1981
        %v2355 = vunpack.c.h.b16 %v1981
        %v2356 = vunpack.c.l.b16 %v1982
        %v2357 = vunpack.c.h.b16 %v1982
        %v2358 = vunpack.c.l.b16 %v1983
        %v2359 = vunpack.c.h.b16 %v1983
        %v2360 = vunpack.c.l.b16 %v1984
        %v2361 = vunpack.c.h.b16 %v1984
        %v2362 = vunpack.c.l.b16 %v1985
        %v2363 = vunpack.c.h.b16 %v1985
        %v2364 = vunpack.c.l.b16 %v1986
        %v2365 = vunpack.c.h.b16 %v1986
        %v2366 = vunpack.c.l.b16 %v1987
        %v2367 = vunpack.c.h.b16 %v1987
        %v2368 = vunpack.c.l.b16 %v1988
        %v2369 = vunpack.c.h.b16 %v1988
        %v2370 = vunpack.c.l.b16 %v1989
        %v2371 = vunpack.c.h.b16 %v1989
        %v2372 = vunpack.c.l.b16 %v1990
        %v2373 = vunpack.c.h.b16 %v1990
        %v2374 = vunpack.c.l.b16 %v1991
        %v2375 = vunpack.c.h.b16 %v1991
        %v2376 = vunpack.c.l.b16 %v1992
        %v2377 = vunpack.c.h.b16 %v1992
        %v2378 = vunpack.c.l.b16 %v1993
        %v2379 = vunpack.c.h.b16 %v1993
        %v2380 = vunpack.c.l.b16 %v1994
        %v2381 = vunpack.c.h.b16 %v1994
        %v2382 = vunpack.c.l.b16 %v1995
        %v2383 = vunpack.c.h.b16 %v1995
        %v2384 = vunpack.c.l.b16 %v1996
        %v2385 = vunpack.c.h.b16 %v1996
        %v2386 = vunpack.c.l.b16 %v1997
        %v2387 = vunpack.c.h.b16 %v1997
        %v2388 = vunpack.c.l.b16 %v1998
        %v2389 = vunpack.c.h.b16 %v1998
        %v2390 = vunpack.c.l.b16 %v1999
        %v2391 = vunpack.c.h.b16 %v1999
        %v2392 = vunpack.c.l.b16 %v2000
        %v2393 = vunpack.c.h.b16 %v2000
        %v2394 = vunpack.c.l.b16 %v2001
        %v2395 = vunpack.c.h.b16 %v2001
        %v2396 = vpack.c.b16 %v2144, %v2140
        %v2397 = vpack.c.b16 %v2145, %v2141
        %v2398 = vpack.c.b16 %v2146, %v2142
        %v2399 = vpack.c.b16 %v2147, %v2143
        %v2400 = vpack.c.b16 %v2152, %v2148
        %v2401 = vpack.c.b16 %v2153, %v2149
        %v2402 = vpack.c.b16 %v2154, %v2150
        %v2403 = vpack.c.b16 %v2155, %v2151
        %v2404 = vpack.c.b16 %v2160, %v2156
        %v2405 = vpack.c.b16 %v2161, %v2157
        %v2406 = vpack.c.b16 %v2162, %v2158
        %v2407 = vpack.c.b16 %v2163, %v2159
        %v2408 = vpack.c.b16 %v2168, %v2164
        %v2409 = vpack.c.b16 %v2169, %v2165
        %v2410 = vpack.c.b16 %v2170, %v2166
        %v2411 = vpack.c.b16 %v2171, %v2167
        %v2412 = vpack.c.b16 %v2176, %v2172
        %v2413 = vpack.c.b16 %v2177, %v2173
        %v2414 = vpack.c.b16 %v2178, %v2174
        %v2415 = vpack.c.b16 %v2179, %v2175
        %v2416 = vpack.c.b16 %v2184, %v2180
        %v2417 = vpack.c.b16 %v2185, %v2181
        %v2418 = vpack.c.b16 %v2186, %v2182
        %v2419 = vpack.c.b16 %v2187, %v2183
        %v2420 = vpack.c.b16 %v2192, %v2188
        %v2421 = vpack.c.b16 %v2193, %v2189
        %v2422 = vpack.c.b16 %v2194, %v2190
        %v2423 = vpack.c.b16 %v2195, %v2191
        %v2424 = vpack.c.b16 %v2200, %v2196
        %v2425 = vpack.c.b16 %v2201, %v2197
        %v2426 = vpack.c.b16 %v2202, %v2198
        %v2427 = vpack.c.b16 %v2203, %v2199
        %v2428 = vpack.c.b16 %v2208, %v2204
        %v2429 = vpack.c.b16 %v2209, %v2205
        %v2430 = vpack.c.b16 %v2210, %v2206
        %v2431 = vpack.c.b16 %v2211, %v2207
        %v2432 = vpack.c.b16 %v2216, %v2212
        %v2433 = vpack.c.b16 %v2217, %v2213
        %v2434 = vpack.c.b16 %v2218, %v2214
        %v2435 = vpack.c.b16 %v2219, %v2215
        %v2436 = vpack.c.b16 %v2224, %v2220
        %v2437 = vpack.c.b16 %v2225, %v2221
        %v2438 = vpack.c.b16 %v2226, %v2222
        %v2439 = vpack.c.b16 %v2227, %v2223
        %v2440 = vpack.c.b16 %v2232, %v2228
        %v2441 = vpack.c.b16 %v2233, %v2229
        %v2442 = vpack.c.b16 %v2234, %v2230
        %v2443 = vpack.c.b16 %v2235, %v2231
        %v2444 = vpack.c.b16 %v2240, %v2236
        %v2445 = vpack.c.b16 %v2241, %v2237
        %v2446 = vpack.c.b16 %v2242, %v2238
        %v2447 = vpack.c.b16 %v2243, %v2239
        %v2448 = vpack.c.b16 %v2248, %v2244
        %v2449 = vpack.c.b16 %v2249, %v2245
        %v2450 = vpack.c.b16 %v2250, %v2246
        %v2451 = vpack.c.b16 %v2251, %v2247
        %v2452 = vpack.c.b16 %v2256, %v2252
        %v2453 = vpack.c.b16 %v2257, %v2253
        %v2454 = vpack.c.b16 %v2258, %v2254
        %v2455 = vpack.c.b16 %v2259, %v2255
        %v2456 = vpack.c.b16 %v2264, %v2260
        %v2457 = vpack.c.b16 %v2265, %v2261
        %v2458 = vpack.c.b16 %v2266, %v2262
        %v2459 = vpack.c.b16 %v2267, %v2263
        %v2460 = vpack.c.b16 %v2272, %v2268
        %v2461 = vpack.c.b16 %v2273, %v2269
        %v2462 = vpack.c.b16 %v2274, %v2270
        %v2463 = vpack.c.b16 %v2275, %v2271
        %v2464 = vpack.c.b16 %v2280, %v2276
        %v2465 = vpack.c.b16 %v2281, %v2277
        %v2466 = vpack.c.b16 %v2282, %v2278
        %v2467 = vpack.c.b16 %v2283, %v2279
        %v2468 = vpack.c.b16 %v2288, %v2284
        %v2469 = vpack.c.b16 %v2289, %v2285
        %v2470 = vpack.c.b16 %v2290, %v2286
        %v2471 = vpack.c.b16 %v2291, %v2287
        %v2472 = vpack.c.b16 %v2296, %v2292
        %v2473 = vpack.c.b16 %v2297, %v2293
        %v2474 = vpack.c.b16 %v2298, %v2294
        %v2475 = vpack.c.b16 %v2299, %v2295
        %v2476 = vpack.c.b16 %v2304, %v2300
        %v2477 = vpack.c.b16 %v2305, %v2301
        %v2478 = vpack.c.b16 %v2306, %v2302
        %v2479 = vpack.c.b16 %v2307, %v2303
        %v2480 = vpack.c.b16 %v2312, %v2308
        %v2481 = vpack.c.b16 %v2313, %v2309
        %v2482 = vpack.c.b16 %v2314, %v2310
        %v2483 = vpack.c.b16 %v2315, %v2311
        %v2484 = vpack.c.b16 %v2320, %v2316
        %v2485 = vpack.c.b16 %v2321, %v2317
        %v2486 = vpack.c.b16 %v2322, %v2318
        %v2487 = vpack.c.b16 %v2323, %v2319
        %v2488 = vpack.c.b16 %v2328, %v2324
        %v2489 = vpack.c.b16 %v2329, %v2325
        %v2490 = vpack.c.b16 %v2330, %v2326
        %v2491 = vpack.c.b16 %v2331, %v2327
        %v2492 = vpack.c.b16 %v2336, %v2332
        %v2493 = vpack.c.b16 %v2337, %v2333
        %v2494 = vpack.c.b16 %v2338, %v2334
        %v2495 = vpack.c.b16 %v2339, %v2335
        %v2496 = vpack.c.b16 %v2344, %v2340
        %v2497 = vpack.c.b16 %v2345, %v2341
        %v2498 = vpack.c.b16 %v2346, %v2342
        %v2499 = vpack.c.b16 %v2347, %v2343
        %v2500 = vpack.c.b16 %v2352, %v2348
        %v2501 = vpack.c.b16 %v2353, %v2349
        %v2502 = vpack.c.b16 %v2354, %v2350
        %v2503 = vpack.c.b16 %v2355, %v2351
        %v2504 = vpack.c.b16 %v2360, %v2356
        %v2505 = vpack.c.b16 %v2361, %v2357
        %v2506 = vpack.c.b16 %v2362, %v2358
        %v2507 = vpack.c.b16 %v2363, %v2359
        %v2508 = vpack.c.b16 %v2368, %v2364
        %v2509 = vpack.c.b16 %v2369, %v2365
        %v2510 = vpack.c.b16 %v2370, %v2366
        %v2511 = vpack.c.b16 %v2371, %v2367
        %v2512 = vpack.c.b16 %v2376, %v2372
        %v2513 = vpack.c.b16 %v2377, %v2373
        %v2514 = vpack.c.b16 %v2378, %v2374
        %v2515 = vpack.c.b16 %v2379, %v2375
        %v2516 = vpack.c.b16 %v2384, %v2380
        %v2517 = vpack.c.b16 %v2385, %v2381
        %v2518 = vpack.c.b16 %v2386, %v2382
        %v2519 = vpack.c.b16 %v2387, %v2383
        %v2520 = vpack.c.b16 %v2392, %v2388
        %v2521 = vpack.c.b16 %v2393, %v2389
        %v2522 = vpack.c.b16 %v2394, %v2390
        %v2523 = vpack.c.b16 %v2395, %v2391
        %2652 = vmatpush.bf16.msra.mxu0 %v2424
        %2653 = vmatpush.bf16.msra.mxu0 %v2420
        %2654 = vmatpush.bf16.msra.mxu0 %v2416
        %2655 = vmatpush.bf16.msra.mxu0 %v2412
        %2656 = vmatpush.bf16.msra.mxu0 %v2408
        %2657 = vmatpush.bf16.msra.mxu0 %v2404
        %2658 = vmatpush.bf16.msra.mxu0 %v2400
        %2659 = vmatpush.bf16.msra.mxu0 %v2396
        %2660 = vmatmul.bf16.gmra.mxu0 %v1866
        %v2661 = vpop.f32.mrf.mxu0
        %v2662 = vadd.f32 %v2004, %v2661
        %v2663 = vpop.f32.mrf.mxu0
        %v2664 = vadd.f32 %v2004, %v2663
        %2665 = vmatmul.bf16.gmra.mxu0 %v1870
        %v2666 = vpop.f32.mrf.mxu0
        %v2667 = vadd.f32 %v2004, %v2666
        %v2668 = vpop.f32.mrf.mxu0
        %v2669 = vadd.f32 %v2004, %v2668
        %2670 = vdwg.mxu0
        %2671 = vmatpush.bf16.msra.mxu0 %v2456
        %2672 = vmatpush.bf16.msra.mxu0 %v2452
        %2673 = vmatpush.bf16.msra.mxu0 %v2448
        %2674 = vmatpush.bf16.msra.mxu0 %v2444
        %2675 = vmatpush.bf16.msra.mxu0 %v2440
        %2676 = vmatpush.bf16.msra.mxu0 %v2436
        %2677 = vmatpush.bf16.msra.mxu0 %v2432
        %2678 = vmatpush.bf16.msra.mxu0 %v2428
        %2679 = vmatmul.bf16.gmra.mxu0 %v1867
        %v2680 = vpop.f32.mrf.mxu0
        %v2681 = vadd.f32 %v2662, %v2680
        %v2682 = vpop.f32.mrf.mxu0
        %v2683 = vadd.f32 %v2664, %v2682
        %2684 = vmatmul.bf16.gmra.mxu0 %v1871
        %v2685 = vpop.f32.mrf.mxu0
        %v2686 = vadd.f32 %v2667, %v2685
        %v2687 = vpop.f32.mrf.mxu0
        %v2688 = vadd.f32 %v2669, %v2687
        %2689 = vdwg.mxu0
        %2690 = vmatpush.bf16.msra.mxu0 %v2488
        %2691 = vmatpush.bf16.msra.mxu0 %v2484
        %2692 = vmatpush.bf16.msra.mxu0 %v2480
        %2693 = vmatpush.bf16.msra.mxu0 %v2476
        %2694 = vmatpush.bf16.msra.mxu0 %v2472
        %2695 = vmatpush.bf16.msra.mxu0 %v2468
        %2696 = vmatpush.bf16.msra.mxu0 %v2464
        %2697 = vmatpush.bf16.msra.mxu0 %v2460
        %2698 = vmatmul.bf16.gmra.mxu0 %v1868
        %v2699 = vpop.f32.mrf.mxu0
        %v2700 = vadd.f32 %v2681, %v2699
        %v2701 = vpop.f32.mrf.mxu0
        %v2702 = vadd.f32 %v2683, %v2701
        %2703 = vmatmul.bf16.gmra.mxu0 %v1872
        %v2704 = vpop.f32.mrf.mxu0
        %v2705 = vadd.f32 %v2686, %v2704
        %v2706 = vpop.f32.mrf.mxu0
        %v2707 = vadd.f32 %v2688, %v2706
        %2708 = vdwg.mxu0
        %2709 = vmatpush.bf16.msra.mxu0 %v2520
        %2710 = vmatpush.bf16.msra.mxu0 %v2516
        %2711 = vmatpush.bf16.msra.mxu0 %v2512
        %2712 = vmatpush.bf16.msra.mxu0 %v2508
        %2713 = vmatpush.bf16.msra.mxu0 %v2504
        %2714 = vmatpush.bf16.msra.mxu0 %v2500
        %2715 = vmatpush.bf16.msra.mxu0 %v2496
        %2716 = vmatpush.bf16.msra.mxu0 %v2492
        %2717 = vmatmul.bf16.gmra.mxu0 %v1869
        %v2718 = vpop.f32.mrf.mxu0
        %v2719 = vadd.f32 %v2700, %v2718
        %v2720 = vpop.f32.mrf.mxu0
        %v2721 = vadd.f32 %v2702, %v2720
        %2722 = vmatmul.bf16.gmra.mxu0 %v1873
        %v2723 = vpop.f32.mrf.mxu0
        %v2724 = vadd.f32 %v2705, %v2723
        %v2725 = vpop.f32.mrf.mxu0
        %v2726 = vadd.f32 %v2707, %v2725
        %2727 = vdwg.mxu0
        %2728 = vmatpush.bf16.msra.mxu0 %v2425
        %2729 = vmatpush.bf16.msra.mxu0 %v2421
        %2730 = vmatpush.bf16.msra.mxu0 %v2417
        %2731 = vmatpush.bf16.msra.mxu0 %v2413
        %2732 = vmatpush.bf16.msra.mxu0 %v2409
        %2733 = vmatpush.bf16.msra.mxu0 %v2405
        %2734 = vmatpush.bf16.msra.mxu0 %v2401
        %2735 = vmatpush.bf16.msra.mxu0 %v2397
        %2736 = vmatmul.bf16.gmra.mxu0 %v1866
        %v2737 = vpop.f32.mrf.mxu0
        %v2738 = vadd.f32 %v2005, %v2737
        %v2739 = vpop.f32.mrf.mxu0
        %v2740 = vadd.f32 %v2005, %v2739
        %2741 = vmatmul.bf16.gmra.mxu0 %v1870
        %v2742 = vpop.f32.mrf.mxu0
        %v2743 = vadd.f32 %v2005, %v2742
        %v2744 = vpop.f32.mrf.mxu0
        %v2745 = vadd.f32 %v2005, %v2744
        %2746 = vdwg.mxu0
        %2747 = vmatpush.bf16.msra.mxu0 %v2457
        %2748 = vmatpush.bf16.msra.mxu0 %v2453
        %2749 = vmatpush.bf16.msra.mxu0 %v2449
        %2750 = vmatpush.bf16.msra.mxu0 %v2445
        %2751 = vmatpush.bf16.msra.mxu0 %v2441
        %2752 = vmatpush.bf16.msra.mxu0 %v2437
        %2753 = vmatpush.bf16.msra.mxu0 %v2433
        %2754 = vmatpush.bf16.msra.mxu0 %v2429
        %2755 = vmatmul.bf16.gmra.mxu0 %v1867
        %v2756 = vpop.f32.mrf.mxu0
        %v2757 = vadd.f32 %v2738, %v2756
        %v2758 = vpop.f32.mrf.mxu0
        %v2759 = vadd.f32 %v2740, %v2758
        %2760 = vmatmul.bf16.gmra.mxu0 %v1871
        %v2761 = vpop.f32.mrf.mxu0
        %v2762 = vadd.f32 %v2743, %v2761
        %v2763 = vpop.f32.mrf.mxu0
        %v2764 = vadd.f32 %v2745, %v2763
        %2765 = vdwg.mxu0
        %2766 = vmatpush.bf16.msra.mxu0 %v2489
        %2767 = vmatpush.bf16.msra.mxu0 %v2485
        %2768 = vmatpush.bf16.msra.mxu0 %v2481
        %2769 = vmatpush.bf16.msra.mxu0 %v2477
        %2770 = vmatpush.bf16.msra.mxu0 %v2473
        %2771 = vmatpush.bf16.msra.mxu0 %v2469
        %2772 = vmatpush.bf16.msra.mxu0 %v2465
        %2773 = vmatpush.bf16.msra.mxu0 %v2461
        %2774 = vmatmul.bf16.gmra.mxu0 %v1868
        %v2775 = vpop.f32.mrf.mxu0
        %v2776 = vadd.f32 %v2757, %v2775
        %v2777 = vpop.f32.mrf.mxu0
        %v2778 = vadd.f32 %v2759, %v2777
        %2779 = vmatmul.bf16.gmra.mxu0 %v1872
        %v2780 = vpop.f32.mrf.mxu0
        %v2781 = vadd.f32 %v2762, %v2780
        %v2782 = vpop.f32.mrf.mxu0
        %v2783 = vadd.f32 %v2764, %v2782
        %2784 = vdwg.mxu0
        %2785 = vmatpush.bf16.msra.mxu0 %v2521
        %2786 = vmatpush.bf16.msra.mxu0 %v2517
        %2787 = vmatpush.bf16.msra.mxu0 %v2513
        %2788 = vmatpush.bf16.msra.mxu0 %v2509
        %2789 = vmatpush.bf16.msra.mxu0 %v2505
        %2790 = vmatpush.bf16.msra.mxu0 %v2501
        %2791 = vmatpush.bf16.msra.mxu0 %v2497
        %2792 = vmatpush.bf16.msra.mxu0 %v2493
        %2793 = vmatmul.bf16.gmra.mxu0 %v1869
        %v2794 = vpop.f32.mrf.mxu0
        %v2795 = vadd.f32 %v2776, %v2794
        %v2796 = vpop.f32.mrf.mxu0
        %v2797 = vadd.f32 %v2778, %v2796
        %2798 = vmatmul.bf16.gmra.mxu0 %v1873
        %v2799 = vpop.f32.mrf.mxu0
        %v2800 = vadd.f32 %v2781, %v2799
        %v2801 = vpop.f32.mrf.mxu0
        %v2802 = vadd.f32 %v2783, %v2801
        %2803 = vdwg.mxu0
        %2804 = vmatpush.bf16.msra.mxu0 %v2426
        %2805 = vmatpush.bf16.msra.mxu0 %v2422
        %2806 = vmatpush.bf16.msra.mxu0 %v2418
        %2807 = vmatpush.bf16.msra.mxu0 %v2414
        %2808 = vmatpush.bf16.msra.mxu0 %v2410
        %2809 = vmatpush.bf16.msra.mxu0 %v2406
        %2810 = vmatpush.bf16.msra.mxu0 %v2402
        %2811 = vmatpush.bf16.msra.mxu0 %v2398
        %2812 = vmatmul.bf16.gmra.mxu0 %v1866
        %v2813 = vpop.f32.mrf.mxu0
        %v2814 = vadd.f32 %v2006, %v2813
        %v2815 = vpop.f32.mrf.mxu0
        %v2816 = vadd.f32 %v2006, %v2815
        %2817 = vmatmul.bf16.gmra.mxu0 %v1870
        %v2818 = vpop.f32.mrf.mxu0
        %v2819 = vadd.f32 %v2006, %v2818
        %v2820 = vpop.f32.mrf.mxu0
        %v2821 = vadd.f32 %v2006, %v2820
        %2822 = vdwg.mxu0
        %2823 = vmatpush.bf16.msra.mxu0 %v2458
        %2824 = vmatpush.bf16.msra.mxu0 %v2454
        %2825 = vmatpush.bf16.msra.mxu0 %v2450
        %2826 = vmatpush.bf16.msra.mxu0 %v2446
        %2827 = vmatpush.bf16.msra.mxu0 %v2442
        %2828 = vmatpush.bf16.msra.mxu0 %v2438
        %2829 = vmatpush.bf16.msra.mxu0 %v2434
        %2830 = vmatpush.bf16.msra.mxu0 %v2430
        %2831 = vmatmul.bf16.gmra.mxu0 %v1867
        %v2832 = vpop.f32.mrf.mxu0
        %v2833 = vadd.f32 %v2814, %v2832
        %v2834 = vpop.f32.mrf.mxu0
        %v2835 = vadd.f32 %v2816, %v2834
        %2836 = vmatmul.bf16.gmra.mxu0 %v1871
        %v2837 = vpop.f32.mrf.mxu0
        %v2838 = vadd.f32 %v2819, %v2837
        %v2839 = vpop.f32.mrf.mxu0
        %v2840 = vadd.f32 %v2821, %v2839
        %2841 = vdwg.mxu0
        %2842 = vmatpush.bf16.msra.mxu0 %v2490
        %2843 = vmatpush.bf16.msra.mxu0 %v2486
        %2844 = vmatpush.bf16.msra.mxu0 %v2482
        %2845 = vmatpush.bf16.msra.mxu0 %v2478
        %2846 = vmatpush.bf16.msra.mxu0 %v2474
        %2847 = vmatpush.bf16.msra.mxu0 %v2470
        %2848 = vmatpush.bf16.msra.mxu0 %v2466
        %2849 = vmatpush.bf16.msra.mxu0 %v2462
        %2850 = vmatmul.bf16.gmra.mxu0 %v1868
        %v2851 = vpop.f32.mrf.mxu0
        %v2852 = vadd.f32 %v2833, %v2851
        %v2853 = vpop.f32.mrf.mxu0
        %v2854 = vadd.f32 %v2835, %v2853
        %2855 = vmatmul.bf16.gmra.mxu0 %v1872
        %v2856 = vpop.f32.mrf.mxu0
        %v2857 = vadd.f32 %v2838, %v2856
        %v2858 = vpop.f32.mrf.mxu0
        %v2859 = vadd.f32 %v2840, %v2858
        %2860 = vdwg.mxu0
        %2861 = vmatpush.bf16.msra.mxu0 %v2522
        %2862 = vmatpush.bf16.msra.mxu0 %v2518
        %2863 = vmatpush.bf16.msra.mxu0 %v2514
        %2864 = vmatpush.bf16.msra.mxu0 %v2510
        %2865 = vmatpush.bf16.msra.mxu0 %v2506
        %2866 = vmatpush.bf16.msra.mxu0 %v2502
        %2867 = vmatpush.bf16.msra.mxu0 %v2498
        %2868 = vmatpush.bf16.msra.mxu0 %v2494
        %2869 = vmatmul.bf16.gmra.mxu0 %v1869
        %v2870 = vpop.f32.mrf.mxu0
        %v2871 = vadd.f32 %v2852, %v2870
        %v2872 = vpop.f32.mrf.mxu0
        %v2873 = vadd.f32 %v2854, %v2872
        %2874 = vmatmul.bf16.gmra.mxu0 %v1873
        %v2875 = vpop.f32.mrf.mxu0
        %v2876 = vadd.f32 %v2857, %v2875
        %v2877 = vpop.f32.mrf.mxu0
        %v2878 = vadd.f32 %v2859, %v2877
        %2879 = vdwg.mxu0
        %2880 = vmatpush.bf16.msra.mxu0 %v2427
        %2881 = vmatpush.bf16.msra.mxu0 %v2423
        %2882 = vmatpush.bf16.msra.mxu0 %v2419
        %2883 = vmatpush.bf16.msra.mxu0 %v2415
        %2884 = vmatpush.bf16.msra.mxu0 %v2411
        %2885 = vmatpush.bf16.msra.mxu0 %v2407
        %2886 = vmatpush.bf16.msra.mxu0 %v2403
        %2887 = vmatpush.bf16.msra.mxu0 %v2399
        %2888 = vmatmul.bf16.gmra.mxu0 %v1866
        %v2889 = vpop.f32.mrf.mxu0
        %v2890 = vadd.f32 %v2007, %v2889
        %v2891 = vpop.f32.mrf.mxu0
        %v2892 = vadd.f32 %v2007, %v2891
        %2893 = vmatmul.bf16.gmra.mxu0 %v1870
        %v2894 = vpop.f32.mrf.mxu0
        %v2895 = vadd.f32 %v2007, %v2894
        %v2896 = vpop.f32.mrf.mxu0
        %v2897 = vadd.f32 %v2007, %v2896
        %2898 = vdwg.mxu0
        %2899 = vmatpush.bf16.msra.mxu0 %v2459
        %2900 = vmatpush.bf16.msra.mxu0 %v2455
        %2901 = vmatpush.bf16.msra.mxu0 %v2451
        %2902 = vmatpush.bf16.msra.mxu0 %v2447
        %2903 = vmatpush.bf16.msra.mxu0 %v2443
        %2904 = vmatpush.bf16.msra.mxu0 %v2439
        %2905 = vmatpush.bf16.msra.mxu0 %v2435
        %2906 = vmatpush.bf16.msra.mxu0 %v2431
        %2907 = vmatmul.bf16.gmra.mxu0 %v1867
        %v2908 = vpop.f32.mrf.mxu0
        %v2909 = vadd.f32 %v2890, %v2908
        %v2910 = vpop.f32.mrf.mxu0
        %v2911 = vadd.f32 %v2892, %v2910
        %2912 = vmatmul.bf16.gmra.mxu0 %v1871
        %v2913 = vpop.f32.mrf.mxu0
        %v2914 = vadd.f32 %v2895, %v2913
        %v2915 = vpop.f32.mrf.mxu0
        %v2916 = vadd.f32 %v2897, %v2915
        %2917 = vdwg.mxu0
        %2918 = vmatpush.bf16.msra.mxu0 %v2491
        %2919 = vmatpush.bf16.msra.mxu0 %v2487
        %2920 = vmatpush.bf16.msra.mxu0 %v2483
        %2921 = vmatpush.bf16.msra.mxu0 %v2479
        %2922 = vmatpush.bf16.msra.mxu0 %v2475
        %2923 = vmatpush.bf16.msra.mxu0 %v2471
        %2924 = vmatpush.bf16.msra.mxu0 %v2467
        %2925 = vmatpush.bf16.msra.mxu0 %v2463
        %2926 = vmatmul.bf16.gmra.mxu0 %v1868
        %v2927 = vpop.f32.mrf.mxu0
        %v2928 = vadd.f32 %v2909, %v2927
        %v2929 = vpop.f32.mrf.mxu0
        %v2930 = vadd.f32 %v2911, %v2929
        %2931 = vmatmul.bf16.gmra.mxu0 %v1872
        %v2932 = vpop.f32.mrf.mxu0
        %v2933 = vadd.f32 %v2914, %v2932
        %v2934 = vpop.f32.mrf.mxu0
        %v2935 = vadd.f32 %v2916, %v2934
        %2936 = vdwg.mxu0
        %2937 = vmatpush.bf16.msra.mxu0 %v2523
        %2938 = vmatpush.bf16.msra.mxu0 %v2519
        %2939 = vmatpush.bf16.msra.mxu0 %v2515
        %2940 = vmatpush.bf16.msra.mxu0 %v2511
        %2941 = vmatpush.bf16.msra.mxu0 %v2507
        %2942 = vmatpush.bf16.msra.mxu0 %v2503
        %2943 = vmatpush.bf16.msra.mxu0 %v2499
        %2944 = vmatpush.bf16.msra.mxu0 %v2495
        %2945 = vmatmul.bf16.gmra.mxu0 %v1869
        %v2946 = vpop.f32.mrf.mxu0
        %v2947 = vadd.f32 %v2928, %v2946
        %v2948 = vpop.f32.mrf.mxu0
        %v2949 = vadd.f32 %v2930, %v2948
        %2950 = vmatmul.bf16.gmra.mxu0 %v1873
        %v2951 = vpop.f32.mrf.mxu0
        %v2952 = vadd.f32 %v2933, %v2951
        %v2953 = vpop.f32.mrf.mxu0
        %v2954 = vadd.f32 %v2935, %v2953
        %2955 = vdwg.mxu0
        %v2956 = vmax.f32 %v2719, 0.0
        %v2957 = vmax.f32 %v2795, 0.0
        %v2958 = vmax.f32 %v2871, 0.0
        %v2959 = vmax.f32 %v2947, 0.0
        %v2960 = vmax.f32 %v2721, 0.0
        %v2961 = vmax.f32 %v2797, 0.0
        %v2962 = vmax.f32 %v2873, 0.0
        %v2963 = vmax.f32 %v2949, 0.0
        %v2964 = vmax.f32 %v2724, 0.0
        %v2965 = vmax.f32 %v2800, 0.0
        %v2966 = vmax.f32 %v2876, 0.0
        %v2967 = vmax.f32 %v2952, 0.0
        %v2968 = vmax.f32 %v2726, 0.0
        %v2969 = vmax.f32 %v2802, 0.0
        %v2970 = vmax.f32 %v2878, 0.0
        %v2971 = vmax.f32 %v2954, 0.0
        %v2972 = vpack.c.bf16 %v2960, %v2956
        %v2973 = vpack.c.bf16 %v2961, %v2957
        %v2974 = vpack.c.bf16 %v2962, %v2958
        %v2975 = vpack.c.bf16 %v2963, %v2959
        %v2976 = vpack.c.bf16 %v2968, %v2964
        %v2977 = vpack.c.bf16 %v2969, %v2965
        %v2978 = vpack.c.bf16 %v2970, %v2966
        %v2979 = vpack.c.bf16 %v2971, %v2967
        %v2980 = vld [vmem:[#allocation13] sm:$0xf]
        %v2981 = vld [vmem:[#allocation13 + $0x4] sm:$0xf]
        %v2982 = vld [vmem:[#allocation13 + $0x8] sm:$0xf]
        %v2983 = vld [vmem:[#allocation13 + $0xc] sm:$0xf]
        %v2984 = vld [vmem:[#allocation13 + $0x10] sm:$0xf]
        %v2985 = vld [vmem:[#allocation13 + $0x14] sm:$0xf]
        %v2986 = vld [vmem:[#allocation13 + $0x18] sm:$0xf]
        %v2987 = vld [vmem:[#allocation13 + $0x1c] sm:$0xf]
        %v2988 = vld [vmem:[#allocation13 + $0x20] sm:$0xf]
        %v2989 = vld [vmem:[#allocation13 + $0x24] sm:$0xf]
        %v2990 = vld [vmem:[#allocation13 + $0x28] sm:$0xf]
        %v2991 = vld [vmem:[#allocation13 + $0x2c] sm:$0xf]
        %v2992 = vld [vmem:[#allocation13 + $0x30] sm:$0xf]
        %v2993 = vld [vmem:[#allocation13 + $0x34] sm:$0xf]
        %v2994 = vld [vmem:[#allocation13 + $0x38] sm:$0xf]
        %v2995 = vld [vmem:[#allocation13 + $0x3c] sm:$0xf]
        %v2996 = vld [vmem:[#allocation13 + $0x40] sm:$0xf]
        %v2997 = vld [vmem:[#allocation13 + $0x44] sm:$0xf]
        %v2998 = vld [vmem:[#allocation13 + $0x48] sm:$0xf]
        %v2999 = vld [vmem:[#allocation13 + $0x4c] sm:$0xf]
        %v3000 = vld [vmem:[#allocation13 + $0x50] sm:$0xf]
        %v3001 = vld [vmem:[#allocation13 + $0x54] sm:$0xf]
        %v3002 = vld [vmem:[#allocation13 + $0x58] sm:$0xf]
        %v3003 = vld [vmem:[#allocation13 + $0x5c] sm:$0xf]
        %v3004 = vld [vmem:[#allocation13 + $0x60] sm:$0xf]
        %v3005 = vld [vmem:[#allocation13 + $0x64] sm:$0xf]
        %v3006 = vld [vmem:[#allocation13 + $0x68] sm:$0xf]
        %v3007 = vld [vmem:[#allocation13 + $0x6c] sm:$0xf]
        %v3008 = vld [vmem:[#allocation13 + $0x70] sm:$0xf]
        %v3009 = vld [vmem:[#allocation13 + $0x74] sm:$0xf]
        %v3010 = vld [vmem:[#allocation13 + $0x78] sm:$0xf]
        %v3011 = vld [vmem:[#allocation13 + $0x7c] sm:$0xf]
        %v3012 = vld [vmem:[#allocation13 + $0x80] sm:$0xf]
        %v3013 = vld [vmem:[#allocation13 + $0x84] sm:$0xf]
        %v3014 = vld [vmem:[#allocation13 + $0x88] sm:$0xf]
        %v3015 = vld [vmem:[#allocation13 + $0x8c] sm:$0xf]
        %v3016 = vld [vmem:[#allocation13 + $0x90] sm:$0xf]
        %v3017 = vld [vmem:[#allocation13 + $0x94] sm:$0xf]
        %v3018 = vld [vmem:[#allocation13 + $0x98] sm:$0xf]
        %v3019 = vld [vmem:[#allocation13 + $0x9c] sm:$0xf]
        %v3020 = vld [vmem:[#allocation13 + $0xa0] sm:$0xf]
        %v3021 = vld [vmem:[#allocation13 + $0xa4] sm:$0xf]
        %v3022 = vld [vmem:[#allocation13 + $0xa8] sm:$0xf]
        %v3023 = vld [vmem:[#allocation13 + $0xac] sm:$0xf]
        %v3024 = vld [vmem:[#allocation13 + $0xb0] sm:$0xf]
        %v3025 = vld [vmem:[#allocation13 + $0xb4] sm:$0xf]
        %v3026 = vld [vmem:[#allocation13 + $0xb8] sm:$0xf]
        %v3027 = vld [vmem:[#allocation13 + $0xbc] sm:$0xf]
        %v3028 = vld [vmem:[#allocation13 + $0xc0] sm:$0xf]
        %v3029 = vld [vmem:[#allocation13 + $0xc4] sm:$0xf]
        %v3030 = vld [vmem:[#allocation13 + $0xc8] sm:$0xf]
        %v3031 = vld [vmem:[#allocation13 + $0xcc] sm:$0xf]
        %v3032 = vld [vmem:[#allocation13 + $0xd0] sm:$0xf]
        %v3033 = vld [vmem:[#allocation13 + $0xd4] sm:$0xf]
        %v3034 = vld [vmem:[#allocation13 + $0xd8] sm:$0xf]
        %v3035 = vld [vmem:[#allocation13 + $0xdc] sm:$0xf]
        %v3036 = vld [vmem:[#allocation13 + $0xe0] sm:$0xf]
        %v3037 = vld [vmem:[#allocation13 + $0xe4] sm:$0xf]
        %v3038 = vld [vmem:[#allocation13 + $0xe8] sm:$0xf]
        %v3039 = vld [vmem:[#allocation13 + $0xec] sm:$0xf]
        %v3040 = vld [vmem:[#allocation13 + $0xf0] sm:$0xf]
        %v3041 = vld [vmem:[#allocation13 + $0xf4] sm:$0xf]
        %v3042 = vld [vmem:[#allocation13 + $0xf8] sm:$0xf]
        %v3043 = vld [vmem:[#allocation13 + $0xfc] sm:$0xf]
        %v3044 = vld [vmem:[%s8] sm:$0x1]
        %v3046 = vperm.slane %v3044, 0
        %v3112 = vunpack.c.l.b16 %v2980
        %v3113 = vunpack.c.l.b16 %v2981
        %v3114 = vunpack.c.l.b16 %v2982
        %v3115 = vunpack.c.l.b16 %v2983
        %v3116 = vunpack.c.l.b16 %v2984
        %v3117 = vunpack.c.l.b16 %v2985
        %v3118 = vunpack.c.l.b16 %v2986
        %v3119 = vunpack.c.l.b16 %v2987
        %v3120 = vunpack.c.l.b16 %v2988
        %v3121 = vunpack.c.l.b16 %v2989
        %v3122 = vunpack.c.l.b16 %v2990
        %v3123 = vunpack.c.l.b16 %v2991
        %v3124 = vunpack.c.l.b16 %v2992
        %v3125 = vunpack.c.l.b16 %v2993
        %v3126 = vunpack.c.l.b16 %v2994
        %v3127 = vunpack.c.l.b16 %v2995
        %v3128 = vunpack.c.l.b16 %v2996
        %v3129 = vunpack.c.l.b16 %v2997
        %v3130 = vunpack.c.l.b16 %v2998
        %v3131 = vunpack.c.l.b16 %v2999
        %v3132 = vunpack.c.l.b16 %v3000
        %v3133 = vunpack.c.l.b16 %v3001
        %v3134 = vunpack.c.l.b16 %v3002
        %v3135 = vunpack.c.l.b16 %v3003
        %v3136 = vunpack.c.l.b16 %v3004
        %v3137 = vunpack.c.l.b16 %v3005
        %v3138 = vunpack.c.l.b16 %v3006
        %v3139 = vunpack.c.l.b16 %v3007
        %v3140 = vunpack.c.l.b16 %v3008
        %v3141 = vunpack.c.l.b16 %v3009
        %v3142 = vunpack.c.l.b16 %v3010
        %v3143 = vunpack.c.l.b16 %v3011
        %v3144 = vunpack.c.l.b16 %v3012
        %v3145 = vunpack.c.l.b16 %v3013
        %v3146 = vunpack.c.l.b16 %v3014
        %v3147 = vunpack.c.l.b16 %v3015
        %v3148 = vunpack.c.l.b16 %v3016
        %v3149 = vunpack.c.l.b16 %v3017
        %v3150 = vunpack.c.l.b16 %v3018
        %v3151 = vunpack.c.l.b16 %v3019
        %v3152 = vunpack.c.l.b16 %v3020
        %v3153 = vunpack.c.l.b16 %v3021
        %v3154 = vunpack.c.l.b16 %v3022
        %v3155 = vunpack.c.l.b16 %v3023
        %v3156 = vunpack.c.l.b16 %v3024
        %v3157 = vunpack.c.l.b16 %v3025
        %v3158 = vunpack.c.l.b16 %v3026
        %v3159 = vunpack.c.l.b16 %v3027
        %v3160 = vunpack.c.l.b16 %v3028
        %v3161 = vunpack.c.l.b16 %v3029
        %v3162 = vunpack.c.l.b16 %v3030
        %v3163 = vunpack.c.l.b16 %v3031
        %v3164 = vunpack.c.l.b16 %v3032
        %v3165 = vunpack.c.l.b16 %v3033
        %v3166 = vunpack.c.l.b16 %v3034
        %v3167 = vunpack.c.l.b16 %v3035
        %v3168 = vunpack.c.l.b16 %v3036
        %v3169 = vunpack.c.l.b16 %v3037
        %v3170 = vunpack.c.l.b16 %v3038
        %v3171 = vunpack.c.l.b16 %v3039
        %v3172 = vunpack.c.l.b16 %v3040
        %v3173 = vunpack.c.l.b16 %v3041
        %v3174 = vunpack.c.l.b16 %v3042
        %v3175 = vunpack.c.l.b16 %v3043
        %v3176 = vpack.c.b16 %v3113, %v3112
        %v3177 = vpack.c.b16 %v3115, %v3114
        %v3178 = vpack.c.b16 %v3117, %v3116
        %v3179 = vpack.c.b16 %v3119, %v3118
        %v3180 = vpack.c.b16 %v3121, %v3120
        %v3181 = vpack.c.b16 %v3123, %v3122
        %v3182 = vpack.c.b16 %v3125, %v3124
        %v3183 = vpack.c.b16 %v3127, %v3126
        %v3184 = vpack.c.b16 %v3129, %v3128
        %v3185 = vpack.c.b16 %v3131, %v3130
        %v3186 = vpack.c.b16 %v3133, %v3132
        %v3187 = vpack.c.b16 %v3135, %v3134
        %v3188 = vpack.c.b16 %v3137, %v3136
        %v3189 = vpack.c.b16 %v3139, %v3138
        %v3190 = vpack.c.b16 %v3141, %v3140
        %v3191 = vpack.c.b16 %v3143, %v3142
        %v3192 = vpack.c.b16 %v3145, %v3144
        %v3193 = vpack.c.b16 %v3147, %v3146
        %v3194 = vpack.c.b16 %v3149, %v3148
        %v3195 = vpack.c.b16 %v3151, %v3150
        %v3196 = vpack.c.b16 %v3153, %v3152
        %v3197 = vpack.c.b16 %v3155, %v3154
        %v3198 = vpack.c.b16 %v3157, %v3156
        %v3199 = vpack.c.b16 %v3159, %v3158
        %v3200 = vpack.c.b16 %v3161, %v3160
        %v3201 = vpack.c.b16 %v3163, %v3162
        %v3202 = vpack.c.b16 %v3165, %v3164
        %v3203 = vpack.c.b16 %v3167, %v3166
        %v3204 = vpack.c.b16 %v3169, %v3168
        %v3205 = vpack.c.b16 %v3171, %v3170
        %v3206 = vpack.c.b16 %v3173, %v3172
        %v3207 = vpack.c.b16 %v3175, %v3174
        %3240 = vmatpush.bf16.msra.mxu0 %v3183
        %3241 = vmatpush.bf16.msra.mxu0 %v3182
        %3242 = vmatpush.bf16.msra.mxu0 %v3181
        %3243 = vmatpush.bf16.msra.mxu0 %v3180
        %3244 = vmatpush.bf16.msra.mxu0 %v3179
        %3245 = vmatpush.bf16.msra.mxu0 %v3178
        %3246 = vmatpush.bf16.msra.mxu0 %v3177
        %3247 = vmatpush.bf16.msra.mxu0 %v3176
        %3248 = vmatmul.bf16.gmra.mxu0 %v2972
        %v3249 = vpop.f32.mrf.mxu0
        %v3250 = vadd.f32 %v3046, %v3249
        %v3251 = vpop.f32.mrf.mxu0
        %v3252 = vadd.f32 %v3046, %v3251
        %3253 = vmatmul.bf16.gmra.mxu0 %v2976
        %v3254 = vpop.f32.mrf.mxu0
        %v3255 = vadd.f32 %v3046, %v3254
        %v3256 = vpop.f32.mrf.mxu0
        %v3257 = vadd.f32 %v3046, %v3256
        %3258 = vdwg.mxu0
        %3259 = vmatpush.bf16.msra.mxu0 %v3191
        %3260 = vmatpush.bf16.msra.mxu0 %v3190
        %3261 = vmatpush.bf16.msra.mxu0 %v3189
        %3262 = vmatpush.bf16.msra.mxu0 %v3188
        %3263 = vmatpush.bf16.msra.mxu0 %v3187
        %3264 = vmatpush.bf16.msra.mxu0 %v3186
        %3265 = vmatpush.bf16.msra.mxu0 %v3185
        %3266 = vmatpush.bf16.msra.mxu0 %v3184
        %3267 = vmatmul.bf16.gmra.mxu0 %v2973
        %v3268 = vpop.f32.mrf.mxu0
        %v3269 = vadd.f32 %v3250, %v3268
        %v3270 = vpop.f32.mrf.mxu0
        %v3271 = vadd.f32 %v3252, %v3270
        %3272 = vmatmul.bf16.gmra.mxu0 %v2977
        %v3273 = vpop.f32.mrf.mxu0
        %v3274 = vadd.f32 %v3255, %v3273
        %v3275 = vpop.f32.mrf.mxu0
        %v3276 = vadd.f32 %v3257, %v3275
        %3277 = vdwg.mxu0
        %3278 = vmatpush.bf16.msra.mxu0 %v3199
        %3279 = vmatpush.bf16.msra.mxu0 %v3198
        %3280 = vmatpush.bf16.msra.mxu0 %v3197
        %3281 = vmatpush.bf16.msra.mxu0 %v3196
        %3282 = vmatpush.bf16.msra.mxu0 %v3195
        %3283 = vmatpush.bf16.msra.mxu0 %v3194
        %3284 = vmatpush.bf16.msra.mxu0 %v3193
        %3285 = vmatpush.bf16.msra.mxu0 %v3192
        %3286 = vmatmul.bf16.gmra.mxu0 %v2974
        %v3287 = vpop.f32.mrf.mxu0
        %v3288 = vadd.f32 %v3269, %v3287
        %v3289 = vpop.f32.mrf.mxu0
        %v3290 = vadd.f32 %v3271, %v3289
        %3291 = vmatmul.bf16.gmra.mxu0 %v2978
        %v3292 = vpop.f32.mrf.mxu0
        %v3293 = vadd.f32 %v3274, %v3292
        %v3294 = vpop.f32.mrf.mxu0
        %v3295 = vadd.f32 %v3276, %v3294
        %3296 = vdwg.mxu0
        %3297 = vmatpush.bf16.msra.mxu0 %v3207
        %3298 = vmatpush.bf16.msra.mxu0 %v3206
        %3299 = vmatpush.bf16.msra.mxu0 %v3205
        %3300 = vmatpush.bf16.msra.mxu0 %v3204
        %3301 = vmatpush.bf16.msra.mxu0 %v3203
        %3302 = vmatpush.bf16.msra.mxu0 %v3202
        %3303 = vmatpush.bf16.msra.mxu0 %v3201
        %3304 = vmatpush.bf16.msra.mxu0 %v3200
        %3305 = vmatmul.bf16.gmra.mxu0 %v2975
        %v3306 = vpop.f32.mrf.mxu0
        %v3307 = vadd.f32 %v3288, %v3306
        %v3308 = vpop.f32.mrf.mxu0
        %v3309 = vadd.f32 %v3290, %v3308
        %3310 = vmatmul.bf16.gmra.mxu0 %v2979
        %v3311 = vpop.f32.mrf.mxu0
        %v3312 = vadd.f32 %v3293, %v3311
        %v3313 = vpop.f32.mrf.mxu0
        %v3314 = vadd.f32 %v3295, %v3313
        %3315 = vdwg.mxu0
        %3316 = vmax.xlane.f32.xlu0 %v3307
        %v3317 = vpop.xlane.xlu0 %3316
        %3318 = vmax.xlane.f32.xlu0 %v3309
        %v3319 = vpop.xlane.xlu0 %3318
        %3320 = vmax.xlane.f32.xlu0 %v3312
        %v3321 = vpop.xlane.xlu0 %3320
        %3322 = vmax.xlane.f32.xlu0 %v3314
        %v3323 = vpop.xlane.xlu0 %3322
        %v3324 = vsub.f32 %v3307, %v3317
        %v3325 = vsub.f32 %v3309, %v3319
        %v3326 = vsub.f32 %v3312, %v3321
        %v3327 = vsub.f32 %v3314, %v3323
        %v3328 = vmul.f32 %v3324, 1.442695
        %v3329 = vpow.pop %v3328
        %v3330 = vmul.f32 %v3325, 1.442695
        %v3331 = vpow.pop %v3330
        %v3332 = vmul.f32 %v3326, 1.442695
        %v3333 = vpow.pop %v3332
        %v3334 = vmul.f32 %v3327, 1.442695
        %v3335 = vpow.pop %v3334
        %3336 = vadd.xlane.f32.xlu0 %v3329
        %v3337 = vpop.xlane.xlu0 %3336
        %3338 = vadd.xlane.f32.xlu0 %v3331
        %v3339 = vpop.xlane.xlu0 %3338
        %3340 = vadd.xlane.f32.xlu0 %v3333
        %v3341 = vpop.xlane.xlu0 %3340
        %3342 = vadd.xlane.f32.xlu0 %v3335
        %v3343 = vpop.xlane.xlu0 %3342
        %v3344 = vrcp.pop %v3337
        %v3345 = vrcp.pop %v3339
        %v3346 = vrcp.pop %v3341
        %v3347 = vrcp.pop %v3343
        %v3348 = vmul.f32 %v3329, %v3344
        %v3349 = vmul.f32 %v3331, %v3345
        %v3350 = vmul.f32 %v3333, %v3346
        %v3351 = vmul.f32 %v3335, %v3347
        %3352 = vst [vmem:[%s447] sm:$0xff] %v3348
        %3353 = vst [vmem:[%s447 + $0x8] sm:$0xff] %v3349
        %3354 = vst [vmem:[%s447 + $0x10] sm:$0xff] %v3350
        %3355 = vst [vmem:[%s447 + $0x18] sm:$0xff] %v3351
        %s3356 = sand.u32 %s231, 1
        %s3357 = scalar_lea.sflag [#allocation4], %s3356
        %s3358 = sand.u32 %s231, 1
        %s3359 = smul.addr %s3358, 32
        %s3360 = scalar_lea.vmem [#allocation14], %s3359
        // Predicated region
        $region85: #{tpu_custom_call.1} parent=55 // pred_check
          %p3361 = pneg %p241
        $region86: #{tpu_custom_call.1} parent=55 // pred_check_branch
          %3363 = sbr.rel (%p3361) target = $region88
        $region87: #{tpu_custom_call.1} parent=55 // pred_region
          %s3364 = smul.u32 4, %s29
          %3366 = vsyncadd %s3357, 0
          %s3367 = smul.addr %s3364, 8
          %s3368 = scalar_lea.hbm %s9, %s3367
          %s3369 = sshll.u32 %s3360, 4
          %s3370 = int_to_ptr.vmem [resolvable:$true] %s3369
          %s3371 = sshll.u32 %s3368, 4
          %s3372 = int_to_ptr.hbm [resolvable:$true] %s3371
          %3377 = dma.vmem_to_hbm [thread:$0]  %s3370, 512, %s3372, %s3357, 128, 128, 8
        $region88: #{tpu_custom_call.1} parent=55 // pred_fallthru
          _
      $region56: #{tpu_custom_call.1} parent=5 // pred_fallthru
        _
      %p3378 = scmp.le.s32.totalorder 2, %s24
      // Predicated region
      $region89: #{tpu_custom_call.1} parent=5 // pred_check
        %p3379 = pneg %p3378
      $region90: #{tpu_custom_call.1} parent=5 // pred_check_branch
        %3381 = sbr.rel (%p3379) target = $region92
      $region91: #{tpu_custom_call.1} parent=5 // pred_region
        %s3382 = ssub.s32 %s24, 2
        // Predicated region
        $region93: #{tpu_custom_call.1} parent=91 // pred_check
          %p3383 = pneg %p247
        $region94: #{tpu_custom_call.1} parent=91 // pred_check_branch
          %3385 = sbr.rel (%p3383) target = $region96
        $region95: #{tpu_custom_call.1} parent=91 // pred_region
          %s3386 = sand.u32 %s232, 1
          %s3387 = scalar_lea.sflag [#allocation4], %s3386
          %s3388 = sand.u32 %s232, 1
          %s3389 = smul.addr %s3388, 32
          %s3390 = scalar_lea.vmem [#allocation14], %s3389
          %3392 = dma.done %s3387, 512
        $region96: #{tpu_custom_call.1} parent=91 // pred_fallthru
          _
      $region92: #{tpu_custom_call.1} parent=5 // pred_fallthru
        _
    $region6: #{tpu_custom_call.1} parent=1 // loop_footer
      %s28 = sadd.s32 1, %s24
    $region7: #{tpu_custom_call.1} parent=1 // loop_footer_branch
      %23 = sbr.rel target = $region3
    $region8: #{tpu_custom_call.1} parent=1 // loop_exit
      _
    %3393 = vsyncpa [#allocation3], 1
    %s3394 = scalar_lea.sflag [#allocation3], 1
    %3395 = vsyncpa %s3394, 1
    %3396 = vsyncpa [#allocation6], 1
    %3397 = vsyncpa [#allocation9], 1
    %3398 = vsyncpa [#allocation12], 1
    %3399 = vsyncpa [#allocation4], 1
    %s3400 = scalar_lea.sflag [#allocation4], 1
    %3401 = vsyncpa %s3400, 1

</llo_original>
